<compile_context>
chip_gen: v7x
topology: tpu7x:2x2x1
jax: 0.10.0
libtpu: 0.0.40
codegen_flags: <defaults>
</compile_context>

<pallas_src>
import functools

import jax
import jax.numpy as jnp
from jax.experimental import pallas as pl
from jax.experimental.pallas import tpu as pltpu

EMBED_DIM = 300
HID1 = 1024
HID2 = 256
NUM_CLASSES = 5
C_PAD = 128   # 5 classes padded up to one full lane width


def _round_up(n, m):
    return ((n + m - 1) // m) * m


def _tanh_dtype():
    """bf16 tanh on v6e/v7x (bf16 EUP path); f32 elsewhere (v5e has no bf16 EUP)."""
    try:
        kind = jax.devices()[0].device_kind.lower()
    except Exception:
        return jnp.float32
    if "v6" in kind or "v7" in kind:
        return jnp.bfloat16
    return jnp.float32


def _choose_batch_tile(B, max_tile):
    """Batch tile: multiple of 16 (native bf16 sublane tile), >= 2 grid steps
    for B >= 32 (so v7x's second TensorCore gets work), capped at max_tile."""
    if B < 32:
        return _round_up(B, 16)
    return min(max_tile, _round_up((B + 1) // 2, 16))


def rnn_kernel(x_ref, w1_ref, b1_ref, w2_ref, b2_ref, w3_ref, b3_ref, out_ref,
               *, tanh_dtype):
    # x arrives as raw f32 (no wrapper-side pad/cast); cast to bf16 right
    # before the MXU so HBM only sees one pass over the input.
    x_bf = x_ref[...].astype(jnp.bfloat16)

    # ---- RNNCell 1 (hx=None -> zeros, so weight_hh drops out; b_ih+b_hh pre-summed) ----
    a1 = jnp.dot(x_bf, w1_ref[...], preferred_element_type=jnp.float32) + b1_ref[...]
    h1 = jnp.tanh(a1.astype(tanh_dtype))
    # Dropout(0.5): identity in inference mode.
    # TODO(synk): training-mode dropout (random mask + 2x scale) not implemented.

    # ---- RNNCell 2 ----
    a2 = jnp.dot(h1.astype(jnp.bfloat16), w2_ref[...],
                 preferred_element_type=jnp.float32) + b2_ref[...]
    h2 = jnp.tanh(a2.astype(tanh_dtype))

    # ---- Linear + ReLU ----
    logits = jnp.dot(h2.astype(jnp.bfloat16), w3_ref[...],
                     preferred_element_type=jnp.float32) + b3_ref[...]
    logits = jnp.maximum(logits, 0.0)

    # ---- Softmax over the 5 real classes (padded lanes -> -inf -> exp = 0) ----
    # ReLU guarantees the max over real classes is finite (>= 0), so masking
    # cannot produce an all-(-inf) row / NaN.
    col = jax.lax.broadcasted_iota(jnp.int32, logits.shape, 1)
    masked = jnp.where(col < NUM_CLASSES, logits, -jnp.inf)
    m = jnp.max(masked, axis=1, keepdims=True)
    e = jnp.exp(masked - m)
    s = jnp.sum(e, axis=1, keepdims=True)
    out_ref[...] = e / s          # exact normalization: rows sum to 1


def rnn_forward(x, params, max_tile=1024):
    """x: (B, 300) float32. Returns (B, 5) softmax probabilities (float32)."""
    w1, b1, w2, b2, w3, b3 = params
    B = x.shape[0]

    TB = _choose_batch_tile(B, max_tile)
    B_pad = _round_up(B, TB)
    if B_pad != B:
        x = jnp.pad(x, ((0, B_pad - B), (0, 0)))   # zero rows, sliced off below

    # Weights / biases: constant index maps (VMEM-resident across grid steps);
    # single-buffered since they never change between steps.
    def const(shape):
        return pl.BlockSpec(shape, lambda i: (0, 0), pipeline_mode=pl.Buffered(1))

    kernel = functools.partial(rnn_kernel, tanh_dtype=_tanh_dtype())

    out_padded = pl.pallas_call(
        kernel,
        out_shape=jax.ShapeDtypeStruct((B_pad, C_PAD), jnp.float32),
        grid=(B_pad // TB,),
        in_specs=[
            # Streamed raw-f32 activation tile; last dim == full array dim (300).
            pl.BlockSpec((TB, EMBED_DIM), lambda i: (i, 0)),
            const((EMBED_DIM, HID1)),
            const((1, HID1)),
            const((HID1, HID2)),
            const((1, HID2)),
            const((HID2, C_PAD)),
            const((1, C_PAD)),
        ],
        out_specs=pl.BlockSpec((TB, C_PAD), lambda i: (i, 0)),
        compiler_params=pltpu.CompilerParams(
            dimension_semantics=("parallel",),
            vmem_limit_bytes=48 * 1024 * 1024,
        ),
    )(x, w1, b1, w2, b2, w3, b3)

    return out_padded[:B, :NUM_CLASSES]


def init_params(key):
    """PyTorch-style uniform(-1/sqrt(h), 1/sqrt(h)) init.

    Weights stored pre-transposed as (in, out) bf16. Per-cell biases
    b_ih + b_hh pre-summed in f32 (hidden state is zero, so weight_hh never
    contributes to the forward pass). W3/b3 padded to 128 output lanes.
    """
    ks = jax.random.split(key, 8)

    def unif(k, shape, bound):
        return jax.random.uniform(k, shape, jnp.float32, -bound, bound)

    s1 = 1.0 / jnp.sqrt(HID1)
    s2 = 1.0 / jnp.sqrt(HID2)
    s3 = 1.0 / jnp.sqrt(HID2)

    # RNNCell 1: weight_ih (1024, 300) -> transposed (300, 1024), bf16 (K kept at 300).
    w1_t = unif(ks[0], (EMBED_DIM, HID1), s1)
    w1 = w1_t.astype(jnp.bfloat16)
    b1 = unif(ks[1], (1, HID1), s1) + unif(ks[2], (1, HID1), s1)  # b_ih + b_hh, f32

    # RNNCell 2: weight_ih (256, 1024) -> transposed (1024, 256), bf16.
    w2_f = unif(ks[3], (HID1, HID2), s2)
    w2 = w2_f.astype(jnp.bfloat16)
    b2 = unif(ks[4], (1, HID2), s2) + unif(ks[5], (1, HID2), s2)  # b_ih + b_hh, f32

    # Linear: (5, 256) -> transposed (256, 5), padded (256, 128), bf16.
    w3_t = unif(ks[6], (HID2, NUM_CLASSES), s3)
    w3 = jnp.zeros((HID2, C_PAD), jnp.bfloat16).at[:, :NUM_CLASSES].set(
        w3_t.astype(jnp.bfloat16))
    b3f = unif(ks[7], (1, NUM_CLASSES), s3)
    b3 = jnp.zeros((1, C_PAD), jnp.float32).at[:, :NUM_CLASSES].set(b3f)

    params = (w1, b1, w2, b2, w3, b3)
    raw = (w1_t, b1, w2_f, b2, w3_t, b3f)
    return params, raw


def reference_forward(x, raw_params, tanh_dtype=jnp.float32):
    """Pure-JAX reference reproducing the kernel's bf16-weight quantization
    (and the same tanh dtype the kernel uses on this chip)."""
    w1_t, b1, w2, b2, w3_t, b3 = raw_params

    def bf(a):
        return a.astype(jnp.bfloat16).astype(jnp.float32)

    xb = bf(x)
    h1 = jnp.tanh((xb @ bf(w1_t) + b1).astype(tanh_dtype)).astype(jnp.float32)
    h2 = jnp.tanh((bf(h1) @ bf(w2) + b2).astype(tanh_dtype)).astype(jnp.float32)
    y = jnp.maximum(bf(h2) @ bf(w3_t) + b3, 0.0)
    return jax.nn.softmax(y, axis=1)


if __name__ == "__main__":
    key = jax.random.PRNGKey(0)
    k_x, k_p = jax.random.split(key)
    params, raw_params = init_params(k_p)
    td = _tanh_dtype()

    # Small batch (single grid step) and a batch that exercises padding + a
    # multi-step ("parallel") grid.
    for B in (8, 48):
        x = jax.random.normal(jax.random.fold_in(k_x, B), (B, EMBED_DIM), jnp.float32)

        out = jax.block_until_ready(rnn_forward(x, params))
        ref = reference_forward(x, raw_params, tanh_dtype=td)

        assert out.shape == (B, NUM_CLASSES)
        # bf16 matmul/tanh path -> relaxed tolerance vs. the bf16-mimicking reference.
        assert jnp.allclose(out, ref, atol=1e-2, rtol=1e-2), "mismatch vs reference"
        # Exact softmax normalization (no approx reciprocal): rows sum to 1.
        assert jnp.allclose(jnp.sum(out, axis=1), 1.0, atol=1e-4)

    print("KERNEL_OK")
</pallas_src>

<mosaic_0001>
module attributes {stable_mosaic.version = 11 : i64} {
  func.func @rnn_kernel(%arg0: i32, %arg1: memref<16x300xf32, #tpu.memory_space<vmem>>, %arg2: memref<300x1024xbf16, #tpu.memory_space<vmem>>, %arg3: memref<1x1024xf32, #tpu.memory_space<vmem>>, %arg4: memref<1024x256xbf16, #tpu.memory_space<vmem>>, %arg5: memref<1x256xf32, #tpu.memory_space<vmem>>, %arg6: memref<256x128xbf16, #tpu.memory_space<vmem>>, %arg7: memref<1x128xf32, #tpu.memory_space<vmem>>, %arg8: memref<16x128xf32, #tpu.memory_space<vmem>>) attributes {dimension_semantics = [#tpu.dimension_semantics<parallel>], iteration_bounds = array<i64: 1>, scalar_prefetch = 0 : i64, scratch_operands = 0 : i64, tpu.core_type = #tpu.core_type<tc>, window_params = [{transform_indices = @transform_0, window_bounds = array<i64: 16, 300>}, {pipeline_mode = #tpu.pipeline_mode<synchronous>, transform_indices = @transform_1, window_bounds = array<i64: 300, 1024>}, {pipeline_mode = #tpu.pipeline_mode<synchronous>, transform_indices = @transform_2, window_bounds = array<i64: 1, 1024>}, {pipeline_mode = #tpu.pipeline_mode<synchronous>, transform_indices = @transform_3, window_bounds = array<i64: 1024, 256>}, {pipeline_mode = #tpu.pipeline_mode<synchronous>, transform_indices = @transform_4, window_bounds = array<i64: 1, 256>}, {pipeline_mode = #tpu.pipeline_mode<synchronous>, transform_indices = @transform_5, window_bounds = array<i64: 256, 128>}, {pipeline_mode = #tpu.pipeline_mode<synchronous>, transform_indices = @transform_6, window_bounds = array<i64: 1, 128>}, {transform_indices = @transform_7, window_bounds = array<i64: 16, 128>}]} {
    %c0 = arith.constant 0 : index
    %c0_0 = arith.constant 0 : index
    %0 = vector.load %arg1[%c0, %c0_0] : memref<16x300xf32, #tpu.memory_space<vmem>>, vector<16x300xf32>
    %1 = arith.truncf %0 : vector<16x300xf32> to vector<16x300xbf16>
    %c0_1 = arith.constant 0 : index
    %c0_2 = arith.constant 0 : index
    %2 = vector.load %arg2[%c0_1, %c0_2] : memref<300x1024xbf16, #tpu.memory_space<vmem>>, vector<300x1024xbf16>
    %cst = arith.constant dense<0.000000e+00> : vector<16x1024xf32>
    %3 = tpu.matmul %1, %2, %cst {dimension_numbers = #tpu.dot_dimension_numbers<[1], [0], [0], [1], [0, 0, 1, 1], [], []>} : vector<16x300xbf16>, vector<300x1024xbf16>, vector<16x1024xf32> -> vector<16x1024xf32>
    %c0_3 = arith.constant 0 : index
    %c0_4 = arith.constant 0 : index
    %4 = vector.load %arg3[%c0_3, %c0_4] : memref<1x1024xf32, #tpu.memory_space<vmem>>, vector<1x1024xf32>
    %5 = vector.broadcast %4 : vector<1x1024xf32> to vector<16x1024xf32>
    %6 = arith.addf %3, %5 : vector<16x1024xf32>
    %7 = math.tanh %6 : vector<16x1024xf32>
    %8 = arith.truncf %7 : vector<16x1024xf32> to vector<16x1024xbf16>
    %c0_5 = arith.constant 0 : index
    %c0_6 = arith.constant 0 : index
    %9 = vector.load %arg4[%c0_5, %c0_6] : memref<1024x256xbf16, #tpu.memory_space<vmem>>, vector<1024x256xbf16>
    %cst_7 = arith.constant dense<0.000000e+00> : vector<16x256xf32>
    %10 = tpu.matmul %8, %9, %cst_7 {dimension_numbers = #tpu.dot_dimension_numbers<[1], [0], [0], [1], [0, 0, 1, 1], [], []>} : vector<16x1024xbf16>, vector<1024x256xbf16>, vector<16x256xf32> -> vector<16x256xf32>
    %c0_8 = arith.constant 0 : index
    %c0_9 = arith.constant 0 : index
    %11 = vector.load %arg5[%c0_8, %c0_9] : memref<1x256xf32, #tpu.memory_space<vmem>>, vector<1x256xf32>
    %12 = vector.broadcast %11 : vector<1x256xf32> to vector<16x256xf32>
    %13 = arith.addf %10, %12 : vector<16x256xf32>
    %14 = math.tanh %13 : vector<16x256xf32>
    %15 = arith.truncf %14 : vector<16x256xf32> to vector<16x256xbf16>
    %c0_10 = arith.constant 0 : index
    %c0_11 = arith.constant 0 : index
    %16 = vector.load %arg6[%c0_10, %c0_11] : memref<256x128xbf16, #tpu.memory_space<vmem>>, vector<256x128xbf16>
    %cst_12 = arith.constant dense<0.000000e+00> : vector<16x128xf32>
    %17 = tpu.matmul %15, %16, %cst_12 {dimension_numbers = #tpu.dot_dimension_numbers<[1], [0], [0], [1], [0, 0, 1, 1], [], []>} : vector<16x256xbf16>, vector<256x128xbf16>, vector<16x128xf32> -> vector<16x128xf32>
    %c0_13 = arith.constant 0 : index
    %c0_14 = arith.constant 0 : index
    %18 = vector.load %arg7[%c0_13, %c0_14] : memref<1x128xf32, #tpu.memory_space<vmem>>, vector<1x128xf32>
    %19 = vector.broadcast %18 : vector<1x128xf32> to vector<16x128xf32>
    %20 = arith.addf %17, %19 : vector<16x128xf32>
    %cst_15 = arith.constant 0.000000e+00 : f32
    %21 = vector.broadcast %cst_15 : f32 to vector<16x128xf32>
    %22 = arith.maximumf %20, %21 : vector<16x128xf32>
    %23 = tpu.iota {dimensions = array<i32: 1>} : vector<16x128xi32>
    %c5_i32 = arith.constant 5 : i32
    %24 = vector.broadcast %c5_i32 : i32 to vector<16x128xi32>
    %25 = arith.cmpi slt, %23, %24 : vector<16x128xi32>
    %cst_16 = arith.constant 0xFF800000 : f32
    %26 = vector.broadcast %cst_16 : f32 to vector<16x128xf32>
    %27 = arith.select %25, %22, %26 : vector<16x128xi1>, vector<16x128xf32>
    %cst_17 = arith.constant dense<0xFF800000> : vector<16xf32>
    %28 = vector.multi_reduction <maximumf>, %27, %cst_17 [1] : vector<16x128xf32> to vector<16xf32>
    %29 = vector.shape_cast %28 : vector<16xf32> to vector<16x1xf32>
    %30 = vector.broadcast %29 : vector<16x1xf32> to vector<16x128xf32>
    %31 = arith.subf %27, %30 : vector<16x128xf32>
    %32 = math.exp %31 : vector<16x128xf32>
    %cst_18 = arith.constant dense<0.000000e+00> : vector<16xf32>
    %33 = vector.multi_reduction <add>, %32, %cst_18 [1] : vector<16x128xf32> to vector<16xf32>
    %34 = vector.shape_cast %33 : vector<16xf32> to vector<16x1xf32>
    %35 = vector.broadcast %34 : vector<16x1xf32> to vector<16x128xf32>
    %36 = arith.divf %32, %35 : vector<16x128xf32>
    %c0_19 = arith.constant 0 : index
    %c0_20 = arith.constant 0 : index
    %37 = vector.load %arg8[%c0_19, %c0_20] : memref<16x128xf32, #tpu.memory_space<vmem>>, vector<16x128xf32>
    tpu.vector_store %arg8[%c0_19, %c0_20], %36 {strides = array<i32>} : memref<16x128xf32, #tpu.memory_space<vmem>>, vector<16x128xf32>,
    return
  }
  func.func @transform_0(%arg0: i32) -> (i32, i32) {
    %c0_i32 = arith.constant 0 : i32
    %c0_i32_0 = arith.constant 0 : i32
    return %arg0, %c0_i32 : i32, i32
  }
  func.func @transform_1(%arg0: i32) -> (i32, i32) {
    %c0_i32 = arith.constant 0 : i32
    %c0_i32_0 = arith.constant 0 : i32
    %c0_i32_1 = arith.constant 0 : i32
    return %c0_i32, %c0_i32_0 : i32, i32
  }
  func.func @transform_2(%arg0: i32) -> (i32, i32) {
    %c0_i32 = arith.constant 0 : i32
    %c0_i32_0 = arith.constant 0 : i32
    %c0_i32_1 = arith.constant 0 : i32
    return %c0_i32, %c0_i32_0 : i32, i32
  }
  func.func @transform_3(%arg0: i32) -> (i32, i32) {
    %c0_i32 = arith.constant 0 : i32
    %c0_i32_0 = arith.constant 0 : i32
    %c0_i32_1 = arith.constant 0 : i32
    return %c0_i32, %c0_i32_0 : i32, i32
  }
  func.func @transform_4(%arg0: i32) -> (i32, i32) {
    %c0_i32 = arith.constant 0 : i32
    %c0_i32_0 = arith.constant 0 : i32
    %c0_i32_1 = arith.constant 0 : i32
    return %c0_i32, %c0_i32_0 : i32, i32
  }
  func.func @transform_5(%arg0: i32) -> (i32, i32) {
    %c0_i32 = arith.constant 0 : i32
    %c0_i32_0 = arith.constant 0 : i32
    %c0_i32_1 = arith.constant 0 : i32
    return %c0_i32, %c0_i32_0 : i32, i32
  }
  func.func @transform_6(%arg0: i32) -> (i32, i32) {
    %c0_i32 = arith.constant 0 : i32
    %c0_i32_0 = arith.constant 0 : i32
    %c0_i32_1 = arith.constant 0 : i32
    return %c0_i32, %c0_i32_0 : i32, i32
  }
  func.func @transform_7(%arg0: i32) -> (i32, i32) {
    %c0_i32 = arith.constant 0 : i32
    %c0_i32_0 = arith.constant 0 : i32
    return %arg0, %c0_i32 : i32, i32
  }
}

</mosaic_0001>

<llo_original>
// kernel: tpu_custom_call.1
$region0: #{tpu_custom_call.1}
  #allocation0 [shape = 'u32[]', space=smem, size = 0x4, offset = 0x4, fixed_abs, tag = 'smem constant byte address 0x4 - core index']
  #allocation1 [shape = 'u32[144,128]{1,0:T(1,128)}', space=vmem, size = 0x12000, scoped, tag = 'internal scratch']
  %s0 = inlined_call_operand.hbm [shape: f32[16,300], index: 0, kind: input, shape index: {}]
  %s1 = inlined_call_operand.hbm [shape: bf16[300,1024], index: 1, kind: input, shape index: {}]
  %s2 = inlined_call_operand.hbm [shape: f32[1,1024], index: 2, kind: input, shape index: {}]
  %s3 = inlined_call_operand.hbm [shape: bf16[1024,256], index: 3, kind: input, shape index: {}]
  %s4 = inlined_call_operand.vmem [shape: f32[1,256], index: 4, kind: input, shape index: {}]
  %s5 = inlined_call_operand.hbm [shape: bf16[256,128], index: 5, kind: input, shape index: {}]
  %s6 = inlined_call_operand.vmem [shape: f32[1,128], index: 6, kind: input, shape index: {}]
  %s7 = inlined_call_operand.hbm [shape: f32[16,128], index: 7, kind: output, shape index: {}]
  %s8 = sld [smem:[#allocation0]]
  $region58: #{tpu_custom_call.1} parent=0
    _
  %s10 = ssub.s32 1, %s8
  %s11 = scalar_select 0, %s10, %s8
  $region1: #{tpu_custom_call.1} parent=0
    #allocation2 [shape = 'u8[24576]{0}', space=vmem, size = 0x6000, scoped, tag = 'input window, operand 0, single buffered']
    #allocation3 [shape = 's32[1]{0}', space=sflag, size = 0x4, scoped, tag = 'scoped memory for tpu_custom_call.1']
    #allocation4 [shape = 's32[1]{0}', space=sflag, size = 0x4, scoped, tag = 'scoped memory for tpu_custom_call.1']
    #allocation5 [shape = 'u8[622592]{0}', space=vmem, size = 0x98000, scoped, tag = 'input window, operand 1, single buffered']
    #allocation6 [shape = 's32[1]{0}', space=sflag, size = 0x4, scoped, tag = 'scoped memory for tpu_custom_call.1']
    #allocation7 [shape = 'u8[4096]{0}', space=vmem, size = 0x1000, scoped, tag = 'input window, operand 2, single buffered']
    #allocation8 [shape = 'u8[524288]{0}', space=vmem, size = 0x80000, scoped, tag = 'input window, operand 3, single buffered']
    #allocation9 [shape = 's32[1]{0}', space=sflag, size = 0x4, scoped, tag = 'scoped memory for tpu_custom_call.1']
    #allocation10 [shape = 'u8[65536]{0}', space=vmem, size = 0x10000, scoped, tag = 'input window, operand 5, single buffered']
    #allocation11 [shape = 'u8[8192]{0}', space=vmem, size = 0x2000, scoped, tag = 'output window, operand 0, single buffered']
    %12 = vsyncpa [#allocation3], 0
    %13 = vsyncpa [#allocation6], 0
    %14 = vsyncpa [#allocation9], 0
    %15 = vsyncpa [#allocation4], 0
    // Predicated region
    $region2: #{tpu_custom_call.1} parent=1 // pred_check
      _
    $region3: #{tpu_custom_call.1} parent=1 // pred_check_branch
      %17 = sbr.rel (0) target = $region5
    $region4: #{tpu_custom_call.1} parent=1 // pred_region
      %s19 = ssub.s32 768, 768
      %20 = vsyncadd [#allocation3], %s19
      %s21 = sshll.u32 [#allocation2], 4
      %s22 = int_to_ptr.vmem [resolvable:$true] %s21
      %27 = dma.hbm_to_vmem [thread:$0]  %s0, 768, %s22, [#allocation3], 384, 384, 24
    $region5: #{tpu_custom_call.1} parent=1 // pred_fallthru
      _
    // Predicated region
    $region6: #{tpu_custom_call.1} parent=1 // pred_check
      _
    $region7: #{tpu_custom_call.1} parent=1 // pred_check_branch
      %29 = sbr.rel (0) target = $region9
    $region8: #{tpu_custom_call.1} parent=1 // pred_region
      %s31 = ssub.s32 19456, 19456
      %32 = vsyncadd [#allocation6], %s31
      %s33 = sshll.u32 [#allocation5], 4
      %s34 = int_to_ptr.vmem [resolvable:$true] %s33
      %39 = dma.hbm_to_vmem [thread:$0]  %s1, 19456, %s34, [#allocation6], 512, 512, 32
    $region9: #{tpu_custom_call.1} parent=1 // pred_fallthru
      _
    // Predicated region
    $region10: #{tpu_custom_call.1} parent=1 // pred_check
      _
    $region11: #{tpu_custom_call.1} parent=1 // pred_check_branch
      %41 = sbr.rel (0) target = $region13
    $region12: #{tpu_custom_call.1} parent=1 // pred_region
      %s43 = ssub.s32 128, 128
      %44 = vsyncadd [#allocation6], %s43
      %s46 = sshll.u32 [#allocation7], 4
      %s47 = int_to_ptr.vmem [resolvable:$true] %s46
      %49 = dma.hbm_to_vmem [thread:$0]  %s2, 128, %s47, [#allocation6]
    $region13: #{tpu_custom_call.1} parent=1 // pred_fallthru
      _
    // Predicated region
    $region14: #{tpu_custom_call.1} parent=1 // pred_check
      _
    $region15: #{tpu_custom_call.1} parent=1 // pred_check_branch
      %51 = sbr.rel (0) target = $region17
    $region16: #{tpu_custom_call.1} parent=1 // pred_region
      %s53 = ssub.s32 16384, 16384
      %54 = vsyncadd [#allocation9], %s53
      %s55 = sshll.u32 [#allocation8], 4
      %s56 = int_to_ptr.vmem [resolvable:$true] %s55
      %61 = dma.hbm_to_vmem [thread:$0]  %s3, 16384, %s56, [#allocation9], 128, 128, 8
    $region17: #{tpu_custom_call.1} parent=1 // pred_fallthru
      _
    // Predicated region
    $region18: #{tpu_custom_call.1} parent=1 // pred_check
      _
    $region19: #{tpu_custom_call.1} parent=1 // pred_check_branch
      %63 = sbr.rel (0) target = $region21
    $region20: #{tpu_custom_call.1} parent=1 // pred_region
      _
    $region21: #{tpu_custom_call.1} parent=1 // pred_fallthru
      _
    // Predicated region
    $region22: #{tpu_custom_call.1} parent=1 // pred_check
      _
    $region23: #{tpu_custom_call.1} parent=1 // pred_check_branch
      %65 = sbr.rel (0) target = $region25
    $region24: #{tpu_custom_call.1} parent=1 // pred_region
      %s67 = ssub.s32 2048, 2048
      %68 = vsyncadd [#allocation9], %s67
      %s69 = sshll.u32 [#allocation10], 4
      %s70 = int_to_ptr.vmem [resolvable:$true] %s69
      %75 = dma.hbm_to_vmem [thread:$0]  %s5, 2048, %s70, [#allocation9], 64, 64, 4
    $region25: #{tpu_custom_call.1} parent=1 // pred_fallthru
      _
    // Predicated region
    $region26: #{tpu_custom_call.1} parent=1 // pred_check
      _
    $region27: #{tpu_custom_call.1} parent=1 // pred_check_branch
      %77 = sbr.rel (0) target = $region29
    $region28: #{tpu_custom_call.1} parent=1 // pred_region
      _
    $region29: #{tpu_custom_call.1} parent=1 // pred_fallthru
      _
    // Predicated region
    $region30: #{tpu_custom_call.1} parent=1 // pred_check
      _
    $region31: #{tpu_custom_call.1} parent=1 // pred_check_branch
      %79 = sbr.rel (0) target = $region33
    $region32: #{tpu_custom_call.1} parent=1 // pred_region
      %80 = dma.done [#allocation3], 768
    $region33: #{tpu_custom_call.1} parent=1 // pred_fallthru
      _
    // Predicated region
    $region34: #{tpu_custom_call.1} parent=1 // pred_check
      _
    $region35: #{tpu_custom_call.1} parent=1 // pred_check_branch
      %82 = sbr.rel (0) target = $region37
    $region36: #{tpu_custom_call.1} parent=1 // pred_region
      %83 = dma.done [#allocation6], 19456
    $region37: #{tpu_custom_call.1} parent=1 // pred_fallthru
      _
    // Predicated region
    $region38: #{tpu_custom_call.1} parent=1 // pred_check
      _
    $region39: #{tpu_custom_call.1} parent=1 // pred_check_branch
      %85 = sbr.rel (0) target = $region41
    $region40: #{tpu_custom_call.1} parent=1 // pred_region
      %86 = dma.done [#allocation6], 128
    $region41: #{tpu_custom_call.1} parent=1 // pred_fallthru
      _
    // Predicated region
    $region42: #{tpu_custom_call.1} parent=1 // pred_check
      _
    $region43: #{tpu_custom_call.1} parent=1 // pred_check_branch
      %88 = sbr.rel (0) target = $region45
    $region44: #{tpu_custom_call.1} parent=1 // pred_region
      %89 = dma.done [#allocation9], 16384
    $region45: #{tpu_custom_call.1} parent=1 // pred_fallthru
      _
    // Predicated region
    $region46: #{tpu_custom_call.1} parent=1 // pred_check
      _
    $region47: #{tpu_custom_call.1} parent=1 // pred_check_branch
      %91 = sbr.rel (0) target = $region49
    $region48: #{tpu_custom_call.1} parent=1 // pred_region
      %92 = dma.done [#allocation9], 2048
    $region49: #{tpu_custom_call.1} parent=1 // pred_fallthru
      _
    %v94 = vld [vmem:[#allocation2] sm:$0xff]
    %v95 = vld [vmem:[#allocation2 + $0x8] sm:$0xff]
    %v96 = vld [vmem:[#allocation2 + $0x10] sm:$0xff]
    %v97 = vld [vmem:[#allocation2 + $0x18] sm:$0xff]
    %v98 = vld [vmem:[#allocation2 + $0x20] sm:$0xff]
    %v99 = vld [vmem:[#allocation2 + $0x28] sm:$0xff]
    %v100 = vpack.c.bf16 %v97, %v94
    %v101 = vpack.c.bf16 %v98, %v95
    %v102 = vpack.c.bf16 %v99, %v96
    %v103 = vld [vmem:[#allocation5] sm:$0xff]
    %v104 = vld [vmem:[#allocation5 + $0x8] sm:$0xff]
    %v105 = vld [vmem:[#allocation5 + $0x10] sm:$0xff]
    %v106 = vld [vmem:[#allocation5 + $0x18] sm:$0xff]
    %v107 = vld [vmem:[#allocation5 + $0x20] sm:$0xff]
    %v108 = vld [vmem:[#allocation5 + $0x28] sm:$0xff]
    %v109 = vld [vmem:[#allocation5 + $0x30] sm:$0xff]
    %v110 = vld [vmem:[#allocation5 + $0x38] sm:$0xff]
    %v111 = vld [vmem:[#allocation5 + $0x40] sm:$0xff]
    %v112 = vld [vmem:[#allocation5 + $0x48] sm:$0xff]
    %v113 = vld [vmem:[#allocation5 + $0x50] sm:$0xff]
    %v114 = vld [vmem:[#allocation5 + $0x58] sm:$0xff]
    %v115 = vld [vmem:[#allocation5 + $0x60] sm:$0xff]
    %v116 = vld [vmem:[#allocation5 + $0x68] sm:$0xff]
    %v117 = vld [vmem:[#allocation5 + $0x70] sm:$0xff]
    %v118 = vld [vmem:[#allocation5 + $0x78] sm:$0xff]
    %v119 = vld [vmem:[#allocation5 + $0x80] sm:$0xff]
    %v120 = vld [vmem:[#allocation5 + $0x88] sm:$0xff]
    %v121 = vld [vmem:[#allocation5 + $0x90] sm:$0xff]
    %v122 = vld [vmem:[#allocation5 + $0x98] sm:$0xff]
    %v123 = vld [vmem:[#allocation5 + $0xa0] sm:$0xff]
    %v124 = vld [vmem:[#allocation5 + $0xa8] sm:$0xff]
    %v125 = vld [vmem:[#allocation5 + $0xb0] sm:$0xff]
    %v126 = vld [vmem:[#allocation5 + $0xb8] sm:$0xff]
    %v127 = vld [vmem:[#allocation5 + $0xc0] sm:$0xff]
    %v128 = vld [vmem:[#allocation5 + $0xc8] sm:$0xff]
    %v129 = vld [vmem:[#allocation5 + $0xd0] sm:$0xff]
    %v130 = vld [vmem:[#allocation5 + $0xd8] sm:$0xff]
    %v131 = vld [vmem:[#allocation5 + $0xe0] sm:$0xff]
    %v132 = vld [vmem:[#allocation5 + $0xe8] sm:$0xff]
    %v133 = vld [vmem:[#allocation5 + $0xf0] sm:$0xff]
    %v134 = vld [vmem:[#allocation5 + $0xf8] sm:$0xff]
    %v135 = vld [vmem:[#allocation5 + $0x100] sm:$0xff]
    %v136 = vld [vmem:[#allocation5 + $0x108] sm:$0xff]
    %v137 = vld [vmem:[#allocation5 + $0x110] sm:$0xff]
    %v138 = vld [vmem:[#allocation5 + $0x118] sm:$0xff]
    %v139 = vld [vmem:[#allocation5 + $0x120] sm:$0xff]
    %v140 = vld [vmem:[#allocation5 + $0x128] sm:$0xff]
    %v141 = vld [vmem:[#allocation5 + $0x130] sm:$0xff]
    %v142 = vld [vmem:[#allocation5 + $0x138] sm:$0xff]
    %v143 = vld [vmem:[#allocation5 + $0x140] sm:$0xff]
    %v144 = vld [vmem:[#allocation5 + $0x148] sm:$0xff]
    %v145 = vld [vmem:[#allocation5 + $0x150] sm:$0xff]
    %v146 = vld [vmem:[#allocation5 + $0x158] sm:$0xff]
    %v147 = vld [vmem:[#allocation5 + $0x160] sm:$0xff]
    %v148 = vld [vmem:[#allocation5 + $0x168] sm:$0xff]
    %v149 = vld [vmem:[#allocation5 + $0x170] sm:$0xff]
    %v150 = vld [vmem:[#allocation5 + $0x178] sm:$0xff]
    %v151 = vld [vmem:[#allocation5 + $0x180] sm:$0xff]
    %v152 = vld [vmem:[#allocation5 + $0x188] sm:$0xff]
    %v153 = vld [vmem:[#allocation5 + $0x190] sm:$0xff]
    %v154 = vld [vmem:[#allocation5 + $0x198] sm:$0xff]
    %v155 = vld [vmem:[#allocation5 + $0x1a0] sm:$0xff]
    %v156 = vld [vmem:[#allocation5 + $0x1a8] sm:$0xff]
    %v157 = vld [vmem:[#allocation5 + $0x1b0] sm:$0xff]
    %v158 = vld [vmem:[#allocation5 + $0x1b8] sm:$0xff]
    %v159 = vld [vmem:[#allocation5 + $0x1c0] sm:$0xff]
    %v160 = vld [vmem:[#allocation5 + $0x1c8] sm:$0xff]
    %v161 = vld [vmem:[#allocation5 + $0x1d0] sm:$0xff]
    %v162 = vld [vmem:[#allocation5 + $0x1d8] sm:$0xff]
    %v163 = vld [vmem:[#allocation5 + $0x1e0] sm:$0xff]
    %v164 = vld [vmem:[#allocation5 + $0x1e8] sm:$0xff]
    %v165 = vld [vmem:[#allocation5 + $0x1f0] sm:$0xff]
    %v166 = vld [vmem:[#allocation5 + $0x1f8] sm:$0xff]
    %v167 = vld [vmem:[#allocation5 + $0x200] sm:$0xff]
    %v168 = vld [vmem:[#allocation5 + $0x208] sm:$0xff]
    %v169 = vld [vmem:[#allocation5 + $0x210] sm:$0xff]
    %v170 = vld [vmem:[#allocation5 + $0x218] sm:$0xff]
    %v171 = vld [vmem:[#allocation5 + $0x220] sm:$0xff]
    %v172 = vld [vmem:[#allocation5 + $0x228] sm:$0xff]
    %v173 = vld [vmem:[#allocation5 + $0x230] sm:$0xff]
    %v174 = vld [vmem:[#allocation5 + $0x238] sm:$0xff]
    %v175 = vld [vmem:[#allocation5 + $0x240] sm:$0xff]
    %v176 = vld [vmem:[#allocation5 + $0x248] sm:$0xff]
    %v177 = vld [vmem:[#allocation5 + $0x250] sm:$0xff]
    %v178 = vld [vmem:[#allocation5 + $0x258] sm:$0xff]
    %v179 = vld [vmem:[#allocation5 + $0x260] sm:$0xff]
    %v180 = vld [vmem:[#allocation5 + $0x268] sm:$0xff]
    %v181 = vld [vmem:[#allocation5 + $0x270] sm:$0xff]
    %v182 = vld [vmem:[#allocation5 + $0x278] sm:$0xff]
    %v183 = vld [vmem:[#allocation5 + $0x280] sm:$0xff]
    %v184 = vld [vmem:[#allocation5 + $0x288] sm:$0xff]
    %v185 = vld [vmem:[#allocation5 + $0x290] sm:$0xff]
    %v186 = vld [vmem:[#allocation5 + $0x298] sm:$0xff]
    %v187 = vld [vmem:[#allocation5 + $0x2a0] sm:$0xff]
    %v188 = vld [vmem:[#allocation5 + $0x2a8] sm:$0xff]
    %v189 = vld [vmem:[#allocation5 + $0x2b0] sm:$0xff]
    %v190 = vld [vmem:[#allocation5 + $0x2b8] sm:$0xff]
    %v191 = vld [vmem:[#allocation5 + $0x2c0] sm:$0xff]
    %v192 = vld [vmem:[#allocation5 + $0x2c8] sm:$0xff]
    %v193 = vld [vmem:[#allocation5 + $0x2d0] sm:$0xff]
    %v194 = vld [vmem:[#allocation5 + $0x2d8] sm:$0xff]
    %v195 = vld [vmem:[#allocation5 + $0x2e0] sm:$0xff]
    %v196 = vld [vmem:[#allocation5 + $0x2e8] sm:$0xff]
    %v197 = vld [vmem:[#allocation5 + $0x2f0] sm:$0xff]
    %v198 = vld [vmem:[#allocation5 + $0x2f8] sm:$0xff]
    %v199 = vld [vmem:[#allocation5 + $0x300] sm:$0xff]
    %v200 = vld [vmem:[#allocation5 + $0x308] sm:$0xff]
    %v201 = vld [vmem:[#allocation5 + $0x310] sm:$0xff]
    %v202 = vld [vmem:[#allocation5 + $0x318] sm:$0xff]
    %v203 = vld [vmem:[#allocation5 + $0x320] sm:$0xff]
    %v204 = vld [vmem:[#allocation5 + $0x328] sm:$0xff]
    %v205 = vld [vmem:[#allocation5 + $0x330] sm:$0xff]
    %v206 = vld [vmem:[#allocation5 + $0x338] sm:$0xff]
    %v207 = vld [vmem:[#allocation5 + $0x340] sm:$0xff]
    %v208 = vld [vmem:[#allocation5 + $0x348] sm:$0xff]
    %v209 = vld [vmem:[#allocation5 + $0x350] sm:$0xff]
    %v210 = vld [vmem:[#allocation5 + $0x358] sm:$0xff]
    %v211 = vld [vmem:[#allocation5 + $0x360] sm:$0xff]
    %v212 = vld [vmem:[#allocation5 + $0x368] sm:$0xff]
    %v213 = vld [vmem:[#allocation5 + $0x370] sm:$0xff]
    %v214 = vld [vmem:[#allocation5 + $0x378] sm:$0xff]
    %v215 = vld [vmem:[#allocation5 + $0x380] sm:$0xff]
    %v216 = vld [vmem:[#allocation5 + $0x388] sm:$0xff]
    %v217 = vld [vmem:[#allocation5 + $0x390] sm:$0xff]
    %v218 = vld [vmem:[#allocation5 + $0x398] sm:$0xff]
    %v219 = vld [vmem:[#allocation5 + $0x3a0] sm:$0xff]
    %v220 = vld [vmem:[#allocation5 + $0x3a8] sm:$0xff]
    %v221 = vld [vmem:[#allocation5 + $0x3b0] sm:$0xff]
    %v222 = vld [vmem:[#allocation5 + $0x3b8] sm:$0xff]
    %v223 = vld [vmem:[#allocation5 + $0x3c0] sm:$0xff]
    %v224 = vld [vmem:[#allocation5 + $0x3c8] sm:$0xff]
    %v225 = vld [vmem:[#allocation5 + $0x3d0] sm:$0xff]
    %v226 = vld [vmem:[#allocation5 + $0x3d8] sm:$0xff]
    %v227 = vld [vmem:[#allocation5 + $0x3e0] sm:$0xff]
    %v228 = vld [vmem:[#allocation5 + $0x3e8] sm:$0xff]
    %v229 = vld [vmem:[#allocation5 + $0x3f0] sm:$0xff]
    %v230 = vld [vmem:[#allocation5 + $0x3f8] sm:$0xff]
    %v231 = vld [vmem:[#allocation5 + $0x400] sm:$0xff]
    %v232 = vld [vmem:[#allocation5 + $0x408] sm:$0xff]
    %v233 = vld [vmem:[#allocation5 + $0x410] sm:$0xff]
    %v234 = vld [vmem:[#allocation5 + $0x418] sm:$0xff]
    %v235 = vld [vmem:[#allocation5 + $0x420] sm:$0xff]
    %v236 = vld [vmem:[#allocation5 + $0x428] sm:$0xff]
    %v237 = vld [vmem:[#allocation5 + $0x430] sm:$0xff]
    %v238 = vld [vmem:[#allocation5 + $0x438] sm:$0xff]
    %v239 = vld [vmem:[#allocation5 + $0x440] sm:$0xff]
    %v240 = vld [vmem:[#allocation5 + $0x448] sm:$0xff]
    %v241 = vld [vmem:[#allocation5 + $0x450] sm:$0xff]
    %v242 = vld [vmem:[#allocation5 + $0x458] sm:$0xff]
    %v243 = vld [vmem:[#allocation5 + $0x460] sm:$0xff]
    %v244 = vld [vmem:[#allocation5 + $0x468] sm:$0xff]
    %v245 = vld [vmem:[#allocation5 + $0x470] sm:$0xff]
    %v246 = vld [vmem:[#allocation5 + $0x478] sm:$0xff]
    %v247 = vld [vmem:[#allocation5 + $0x480] sm:$0xff]
    %v248 = vld [vmem:[#allocation5 + $0x488] sm:$0xff]
    %v249 = vld [vmem:[#allocation5 + $0x490] sm:$0xff]
    %v250 = vld [vmem:[#allocation5 + $0x498] sm:$0xff]
    %v251 = vld [vmem:[#allocation5 + $0x4a0] sm:$0x33]
    %v252 = vld [vmem:[#allocation5 + $0x4a8] sm:$0x33]
    %v253 = vld [vmem:[#allocation5 + $0x4b0] sm:$0x33]
    %v254 = vld [vmem:[#allocation5 + $0x4b8] sm:$0x33]
    %v255 = vld [vmem:[#allocation7] sm:$0xff]
    %v257 = vlaneseq
    %v258 = vshrl.u32 %v257, 7
    %v259 = vsub.s32 0, %v258
    %v260 = vrot.slane %v255, %v259
    %v261 = vlaneseq
    %v262 = vshrl.u32 %v261, 7
    %v263 = vsub.s32 1, %v262
    %v264 = vrot.slane %v255, %v263
    %v265 = vlaneseq
    %v266 = vshrl.u32 %v265, 7
    %v267 = vsub.s32 2, %v266
    %v268 = vrot.slane %v255, %v267
    %v269 = vlaneseq
    %v270 = vshrl.u32 %v269, 7
    %v271 = vsub.s32 3, %v270
    %v272 = vrot.slane %v255, %v271
    %v273 = vlaneseq
    %v274 = vshrl.u32 %v273, 7
    %v275 = vsub.s32 4, %v274
    %v276 = vrot.slane %v255, %v275
    %v277 = vlaneseq
    %v278 = vshrl.u32 %v277, 7
    %v279 = vsub.s32 5, %v278
    %v280 = vrot.slane %v255, %v279
    %v281 = vlaneseq
    %v282 = vshrl.u32 %v281, 7
    %v283 = vsub.s32 6, %v282
    %v284 = vrot.slane %v255, %v283
    %v285 = vlaneseq
    %v286 = vshrl.u32 %v285, 7
    %v287 = vsub.s32 7, %v286
    %v288 = vrot.slane %v255, %v287
    %v449 = vunpack.c.l.b16 %v103
    %v450 = vunpack.c.h.b16 %v103
    %v451 = vunpack.c.l.b16 %v104
    %v452 = vunpack.c.h.b16 %v104
    %v453 = vunpack.c.l.b16 %v105
    %v454 = vunpack.c.h.b16 %v105
    %v455 = vunpack.c.l.b16 %v106
    %v456 = vunpack.c.h.b16 %v106
    %v457 = vunpack.c.l.b16 %v107
    %v458 = vunpack.c.h.b16 %v107
    %v459 = vunpack.c.l.b16 %v108
    %v460 = vunpack.c.h.b16 %v108
    %v461 = vunpack.c.l.b16 %v109
    %v462 = vunpack.c.h.b16 %v109
    %v463 = vunpack.c.l.b16 %v110
    %v464 = vunpack.c.h.b16 %v110
    %v465 = vunpack.c.l.b16 %v111
    %v466 = vunpack.c.h.b16 %v111
    %v467 = vunpack.c.l.b16 %v112
    %v468 = vunpack.c.h.b16 %v112
    %v469 = vunpack.c.l.b16 %v113
    %v470 = vunpack.c.h.b16 %v113
    %v471 = vunpack.c.l.b16 %v114
    %v472 = vunpack.c.h.b16 %v114
    %v473 = vunpack.c.l.b16 %v115
    %v474 = vunpack.c.h.b16 %v115
    %v475 = vunpack.c.l.b16 %v116
    %v476 = vunpack.c.h.b16 %v116
    %v477 = vunpack.c.l.b16 %v117
    %v478 = vunpack.c.h.b16 %v117
    %v479 = vunpack.c.l.b16 %v118
    %v480 = vunpack.c.h.b16 %v118
    %v481 = vunpack.c.l.b16 %v119
    %v482 = vunpack.c.h.b16 %v119
    %v483 = vunpack.c.l.b16 %v120
    %v484 = vunpack.c.h.b16 %v120
    %v485 = vunpack.c.l.b16 %v121
    %v486 = vunpack.c.h.b16 %v121
    %v487 = vunpack.c.l.b16 %v122
    %v488 = vunpack.c.h.b16 %v122
    %v489 = vunpack.c.l.b16 %v123
    %v490 = vunpack.c.h.b16 %v123
    %v491 = vunpack.c.l.b16 %v124
    %v492 = vunpack.c.h.b16 %v124
    %v493 = vunpack.c.l.b16 %v125
    %v494 = vunpack.c.h.b16 %v125
    %v495 = vunpack.c.l.b16 %v126
    %v496 = vunpack.c.h.b16 %v126
    %v497 = vunpack.c.l.b16 %v127
    %v498 = vunpack.c.h.b16 %v127
    %v499 = vunpack.c.l.b16 %v128
    %v500 = vunpack.c.h.b16 %v128
    %v501 = vunpack.c.l.b16 %v129
    %v502 = vunpack.c.h.b16 %v129
    %v503 = vunpack.c.l.b16 %v130
    %v504 = vunpack.c.h.b16 %v130
    %v505 = vunpack.c.l.b16 %v131
    %v506 = vunpack.c.h.b16 %v131
    %v507 = vunpack.c.l.b16 %v132
    %v508 = vunpack.c.h.b16 %v132
    %v509 = vunpack.c.l.b16 %v133
    %v510 = vunpack.c.h.b16 %v133
    %v511 = vunpack.c.l.b16 %v134
    %v512 = vunpack.c.h.b16 %v134
    %v513 = vunpack.c.l.b16 %v135
    %v514 = vunpack.c.h.b16 %v135
    %v515 = vunpack.c.l.b16 %v136
    %v516 = vunpack.c.h.b16 %v136
    %v517 = vunpack.c.l.b16 %v137
    %v518 = vunpack.c.h.b16 %v137
    %v519 = vunpack.c.l.b16 %v138
    %v520 = vunpack.c.h.b16 %v138
    %v521 = vunpack.c.l.b16 %v139
    %v522 = vunpack.c.h.b16 %v139
    %v523 = vunpack.c.l.b16 %v140
    %v524 = vunpack.c.h.b16 %v140
    %v525 = vunpack.c.l.b16 %v141
    %v526 = vunpack.c.h.b16 %v141
    %v527 = vunpack.c.l.b16 %v142
    %v528 = vunpack.c.h.b16 %v142
    %v529 = vunpack.c.l.b16 %v143
    %v530 = vunpack.c.h.b16 %v143
    %v531 = vunpack.c.l.b16 %v144
    %v532 = vunpack.c.h.b16 %v144
    %v533 = vunpack.c.l.b16 %v145
    %v534 = vunpack.c.h.b16 %v145
    %v535 = vunpack.c.l.b16 %v146
    %v536 = vunpack.c.h.b16 %v146
    %v537 = vunpack.c.l.b16 %v147
    %v538 = vunpack.c.h.b16 %v147
    %v539 = vunpack.c.l.b16 %v148
    %v540 = vunpack.c.h.b16 %v148
    %v541 = vunpack.c.l.b16 %v149
    %v542 = vunpack.c.h.b16 %v149
    %v543 = vunpack.c.l.b16 %v150
    %v544 = vunpack.c.h.b16 %v150
    %v545 = vunpack.c.l.b16 %v151
    %v546 = vunpack.c.h.b16 %v151
    %v547 = vunpack.c.l.b16 %v152
    %v548 = vunpack.c.h.b16 %v152
    %v549 = vunpack.c.l.b16 %v153
    %v550 = vunpack.c.h.b16 %v153
    %v551 = vunpack.c.l.b16 %v154
    %v552 = vunpack.c.h.b16 %v154
    %v553 = vunpack.c.l.b16 %v155
    %v554 = vunpack.c.h.b16 %v155
    %v555 = vunpack.c.l.b16 %v156
    %v556 = vunpack.c.h.b16 %v156
    %v557 = vunpack.c.l.b16 %v157
    %v558 = vunpack.c.h.b16 %v157
    %v559 = vunpack.c.l.b16 %v158
    %v560 = vunpack.c.h.b16 %v158
    %v561 = vunpack.c.l.b16 %v159
    %v562 = vunpack.c.h.b16 %v159
    %v563 = vunpack.c.l.b16 %v160
    %v564 = vunpack.c.h.b16 %v160
    %v565 = vunpack.c.l.b16 %v161
    %v566 = vunpack.c.h.b16 %v161
    %v567 = vunpack.c.l.b16 %v162
    %v568 = vunpack.c.h.b16 %v162
    %v569 = vunpack.c.l.b16 %v163
    %v570 = vunpack.c.h.b16 %v163
    %v571 = vunpack.c.l.b16 %v164
    %v572 = vunpack.c.h.b16 %v164
    %v573 = vunpack.c.l.b16 %v165
    %v574 = vunpack.c.h.b16 %v165
    %v575 = vunpack.c.l.b16 %v166
    %v576 = vunpack.c.h.b16 %v166
    %v577 = vunpack.c.l.b16 %v167
    %v578 = vunpack.c.h.b16 %v167
    %v579 = vunpack.c.l.b16 %v168
    %v580 = vunpack.c.h.b16 %v168
    %v581 = vunpack.c.l.b16 %v169
    %v582 = vunpack.c.h.b16 %v169
    %v583 = vunpack.c.l.b16 %v170
    %v584 = vunpack.c.h.b16 %v170
    %v585 = vunpack.c.l.b16 %v171
    %v586 = vunpack.c.h.b16 %v171
    %v587 = vunpack.c.l.b16 %v172
    %v588 = vunpack.c.h.b16 %v172
    %v589 = vunpack.c.l.b16 %v173
    %v590 = vunpack.c.h.b16 %v173
    %v591 = vunpack.c.l.b16 %v174
    %v592 = vunpack.c.h.b16 %v174
    %v593 = vunpack.c.l.b16 %v175
    %v594 = vunpack.c.h.b16 %v175
    %v595 = vunpack.c.l.b16 %v176
    %v596 = vunpack.c.h.b16 %v176
    %v597 = vunpack.c.l.b16 %v177
    %v598 = vunpack.c.h.b16 %v177
    %v599 = vunpack.c.l.b16 %v178
    %v600 = vunpack.c.h.b16 %v178
    %v601 = vunpack.c.l.b16 %v179
    %v602 = vunpack.c.h.b16 %v179
    %v603 = vunpack.c.l.b16 %v180
    %v604 = vunpack.c.h.b16 %v180
    %v605 = vunpack.c.l.b16 %v181
    %v606 = vunpack.c.h.b16 %v181
    %v607 = vunpack.c.l.b16 %v182
    %v608 = vunpack.c.h.b16 %v182
    %v609 = vunpack.c.l.b16 %v183
    %v610 = vunpack.c.h.b16 %v183
    %v611 = vunpack.c.l.b16 %v184
    %v612 = vunpack.c.h.b16 %v184
    %v613 = vunpack.c.l.b16 %v185
    %v614 = vunpack.c.h.b16 %v185
    %v615 = vunpack.c.l.b16 %v186
    %v616 = vunpack.c.h.b16 %v186
    %v617 = vunpack.c.l.b16 %v187
    %v618 = vunpack.c.h.b16 %v187
    %v619 = vunpack.c.l.b16 %v188
    %v620 = vunpack.c.h.b16 %v188
    %v621 = vunpack.c.l.b16 %v189
    %v622 = vunpack.c.h.b16 %v189
    %v623 = vunpack.c.l.b16 %v190
    %v624 = vunpack.c.h.b16 %v190
    %v625 = vunpack.c.l.b16 %v191
    %v626 = vunpack.c.h.b16 %v191
    %v627 = vunpack.c.l.b16 %v192
    %v628 = vunpack.c.h.b16 %v192
    %v629 = vunpack.c.l.b16 %v193
    %v630 = vunpack.c.h.b16 %v193
    %v631 = vunpack.c.l.b16 %v194
    %v632 = vunpack.c.h.b16 %v194
    %v633 = vunpack.c.l.b16 %v195
    %v634 = vunpack.c.h.b16 %v195
    %v635 = vunpack.c.l.b16 %v196
    %v636 = vunpack.c.h.b16 %v196
    %v637 = vunpack.c.l.b16 %v197
    %v638 = vunpack.c.h.b16 %v197
    %v639 = vunpack.c.l.b16 %v198
    %v640 = vunpack.c.h.b16 %v198
    %v641 = vunpack.c.l.b16 %v199
    %v642 = vunpack.c.h.b16 %v199
    %v643 = vunpack.c.l.b16 %v200
    %v644 = vunpack.c.h.b16 %v200
    %v645 = vunpack.c.l.b16 %v201
    %v646 = vunpack.c.h.b16 %v201
    %v647 = vunpack.c.l.b16 %v202
    %v648 = vunpack.c.h.b16 %v202
    %v649 = vunpack.c.l.b16 %v203
    %v650 = vunpack.c.h.b16 %v203
    %v651 = vunpack.c.l.b16 %v204
    %v652 = vunpack.c.h.b16 %v204
    %v653 = vunpack.c.l.b16 %v205
    %v654 = vunpack.c.h.b16 %v205
    %v655 = vunpack.c.l.b16 %v206
    %v656 = vunpack.c.h.b16 %v206
    %v657 = vunpack.c.l.b16 %v207
    %v658 = vunpack.c.h.b16 %v207
    %v659 = vunpack.c.l.b16 %v208
    %v660 = vunpack.c.h.b16 %v208
    %v661 = vunpack.c.l.b16 %v209
    %v662 = vunpack.c.h.b16 %v209
    %v663 = vunpack.c.l.b16 %v210
    %v664 = vunpack.c.h.b16 %v210
    %v665 = vunpack.c.l.b16 %v211
    %v666 = vunpack.c.h.b16 %v211
    %v667 = vunpack.c.l.b16 %v212
    %v668 = vunpack.c.h.b16 %v212
    %v669 = vunpack.c.l.b16 %v213
    %v670 = vunpack.c.h.b16 %v213
    %v671 = vunpack.c.l.b16 %v214
    %v672 = vunpack.c.h.b16 %v214
    %v673 = vunpack.c.l.b16 %v215
    %v674 = vunpack.c.h.b16 %v215
    %v675 = vunpack.c.l.b16 %v216
    %v676 = vunpack.c.h.b16 %v216
    %v677 = vunpack.c.l.b16 %v217
    %v678 = vunpack.c.h.b16 %v217
    %v679 = vunpack.c.l.b16 %v218
    %v680 = vunpack.c.h.b16 %v218
    %v681 = vunpack.c.l.b16 %v219
    %v682 = vunpack.c.h.b16 %v219
    %v683 = vunpack.c.l.b16 %v220
    %v684 = vunpack.c.h.b16 %v220
    %v685 = vunpack.c.l.b16 %v221
    %v686 = vunpack.c.h.b16 %v221
    %v687 = vunpack.c.l.b16 %v222
    %v688 = vunpack.c.h.b16 %v222
    %v689 = vunpack.c.l.b16 %v223
    %v690 = vunpack.c.h.b16 %v223
    %v691 = vunpack.c.l.b16 %v224
    %v692 = vunpack.c.h.b16 %v224
    %v693 = vunpack.c.l.b16 %v225
    %v694 = vunpack.c.h.b16 %v225
    %v695 = vunpack.c.l.b16 %v226
    %v696 = vunpack.c.h.b16 %v226
    %v697 = vunpack.c.l.b16 %v227
    %v698 = vunpack.c.h.b16 %v227
    %v699 = vunpack.c.l.b16 %v228
    %v700 = vunpack.c.h.b16 %v228
    %v701 = vunpack.c.l.b16 %v229
    %v702 = vunpack.c.h.b16 %v229
    %v703 = vunpack.c.l.b16 %v230
    %v704 = vunpack.c.h.b16 %v230
    %v705 = vunpack.c.l.b16 %v231
    %v706 = vunpack.c.h.b16 %v231
    %v707 = vunpack.c.l.b16 %v232
    %v708 = vunpack.c.h.b16 %v232
    %v709 = vunpack.c.l.b16 %v233
    %v710 = vunpack.c.h.b16 %v233
    %v711 = vunpack.c.l.b16 %v234
    %v712 = vunpack.c.h.b16 %v234
    %v713 = vunpack.c.l.b16 %v235
    %v714 = vunpack.c.h.b16 %v235
    %v715 = vunpack.c.l.b16 %v236
    %v716 = vunpack.c.h.b16 %v236
    %v717 = vunpack.c.l.b16 %v237
    %v718 = vunpack.c.h.b16 %v237
    %v719 = vunpack.c.l.b16 %v238
    %v720 = vunpack.c.h.b16 %v238
    %v721 = vunpack.c.l.b16 %v239
    %v722 = vunpack.c.h.b16 %v239
    %v723 = vunpack.c.l.b16 %v240
    %v724 = vunpack.c.h.b16 %v240
    %v725 = vunpack.c.l.b16 %v241
    %v726 = vunpack.c.h.b16 %v241
    %v727 = vunpack.c.l.b16 %v242
    %v728 = vunpack.c.h.b16 %v242
    %v729 = vunpack.c.l.b16 %v243
    %v730 = vunpack.c.h.b16 %v243
    %v731 = vunpack.c.l.b16 %v244
    %v732 = vunpack.c.h.b16 %v244
    %v733 = vunpack.c.l.b16 %v245
    %v734 = vunpack.c.h.b16 %v245
    %v735 = vunpack.c.l.b16 %v246
    %v736 = vunpack.c.h.b16 %v246
    %v737 = vunpack.c.l.b16 %v247
    %v738 = vunpack.c.h.b16 %v247
    %v739 = vunpack.c.l.b16 %v248
    %v740 = vunpack.c.h.b16 %v248
    %v741 = vunpack.c.l.b16 %v249
    %v742 = vunpack.c.h.b16 %v249
    %v743 = vunpack.c.l.b16 %v250
    %v744 = vunpack.c.h.b16 %v250
    %v745 = vunpack.c.l.b16 %v251
    %v746 = vunpack.c.h.b16 %v251
    %v747 = vunpack.c.l.b16 %v252
    %v748 = vunpack.c.h.b16 %v252
    %v749 = vunpack.c.l.b16 %v253
    %v750 = vunpack.c.h.b16 %v253
    %v751 = vunpack.c.l.b16 %v254
    %v752 = vunpack.c.h.b16 %v254
    %v753 = vpack.c.b16 %v457, %v449
    %v754 = vpack.c.b16 %v458, %v450
    %v755 = vpack.c.b16 %v459, %v451
    %v756 = vpack.c.b16 %v460, %v452
    %v757 = vpack.c.b16 %v461, %v453
    %v758 = vpack.c.b16 %v462, %v454
    %v759 = vpack.c.b16 %v463, %v455
    %v760 = vpack.c.b16 %v464, %v456
    %v761 = vpack.c.b16 %v473, %v465
    %v762 = vpack.c.b16 %v474, %v466
    %v763 = vpack.c.b16 %v475, %v467
    %v764 = vpack.c.b16 %v476, %v468
    %v765 = vpack.c.b16 %v477, %v469
    %v766 = vpack.c.b16 %v478, %v470
    %v767 = vpack.c.b16 %v479, %v471
    %v768 = vpack.c.b16 %v480, %v472
    %v769 = vpack.c.b16 %v489, %v481
    %v770 = vpack.c.b16 %v490, %v482
    %v771 = vpack.c.b16 %v491, %v483
    %v772 = vpack.c.b16 %v492, %v484
    %v773 = vpack.c.b16 %v493, %v485
    %v774 = vpack.c.b16 %v494, %v486
    %v775 = vpack.c.b16 %v495, %v487
    %v776 = vpack.c.b16 %v496, %v488
    %v777 = vpack.c.b16 %v505, %v497
    %v778 = vpack.c.b16 %v506, %v498
    %v779 = vpack.c.b16 %v507, %v499
    %v780 = vpack.c.b16 %v508, %v500
    %v781 = vpack.c.b16 %v509, %v501
    %v782 = vpack.c.b16 %v510, %v502
    %v783 = vpack.c.b16 %v511, %v503
    %v784 = vpack.c.b16 %v512, %v504
    %v785 = vpack.c.b16 %v521, %v513
    %v786 = vpack.c.b16 %v522, %v514
    %v787 = vpack.c.b16 %v523, %v515
    %v788 = vpack.c.b16 %v524, %v516
    %v789 = vpack.c.b16 %v525, %v517
    %v790 = vpack.c.b16 %v526, %v518
    %v791 = vpack.c.b16 %v527, %v519
    %v792 = vpack.c.b16 %v528, %v520
    %v793 = vpack.c.b16 %v537, %v529
    %v794 = vpack.c.b16 %v538, %v530
    %v795 = vpack.c.b16 %v539, %v531
    %v796 = vpack.c.b16 %v540, %v532
    %v797 = vpack.c.b16 %v541, %v533
    %v798 = vpack.c.b16 %v542, %v534
    %v799 = vpack.c.b16 %v543, %v535
    %v800 = vpack.c.b16 %v544, %v536
    %v801 = vpack.c.b16 %v553, %v545
    %v802 = vpack.c.b16 %v554, %v546
    %v803 = vpack.c.b16 %v555, %v547
    %v804 = vpack.c.b16 %v556, %v548
    %v805 = vpack.c.b16 %v557, %v549
    %v806 = vpack.c.b16 %v558, %v550
    %v807 = vpack.c.b16 %v559, %v551
    %v808 = vpack.c.b16 %v560, %v552
    %v809 = vpack.c.b16 %v569, %v561
    %v810 = vpack.c.b16 %v570, %v562
    %v811 = vpack.c.b16 %v571, %v563
    %v812 = vpack.c.b16 %v572, %v564
    %v813 = vpack.c.b16 %v573, %v565
    %v814 = vpack.c.b16 %v574, %v566
    %v815 = vpack.c.b16 %v575, %v567
    %v816 = vpack.c.b16 %v576, %v568
    %v817 = vpack.c.b16 %v585, %v577
    %v818 = vpack.c.b16 %v586, %v578
    %v819 = vpack.c.b16 %v587, %v579
    %v820 = vpack.c.b16 %v588, %v580
    %v821 = vpack.c.b16 %v589, %v581
    %v822 = vpack.c.b16 %v590, %v582
    %v823 = vpack.c.b16 %v591, %v583
    %v824 = vpack.c.b16 %v592, %v584
    %v825 = vpack.c.b16 %v601, %v593
    %v826 = vpack.c.b16 %v602, %v594
    %v827 = vpack.c.b16 %v603, %v595
    %v828 = vpack.c.b16 %v604, %v596
    %v829 = vpack.c.b16 %v605, %v597
    %v830 = vpack.c.b16 %v606, %v598
    %v831 = vpack.c.b16 %v607, %v599
    %v832 = vpack.c.b16 %v608, %v600
    %v833 = vpack.c.b16 %v617, %v609
    %v834 = vpack.c.b16 %v618, %v610
    %v835 = vpack.c.b16 %v619, %v611
    %v836 = vpack.c.b16 %v620, %v612
    %v837 = vpack.c.b16 %v621, %v613
    %v838 = vpack.c.b16 %v622, %v614
    %v839 = vpack.c.b16 %v623, %v615
    %v840 = vpack.c.b16 %v624, %v616
    %v841 = vpack.c.b16 %v633, %v625
    %v842 = vpack.c.b16 %v634, %v626
    %v843 = vpack.c.b16 %v635, %v627
    %v844 = vpack.c.b16 %v636, %v628
    %v845 = vpack.c.b16 %v637, %v629
    %v846 = vpack.c.b16 %v638, %v630
    %v847 = vpack.c.b16 %v639, %v631
    %v848 = vpack.c.b16 %v640, %v632
    %v849 = vpack.c.b16 %v649, %v641
    %v850 = vpack.c.b16 %v650, %v642
    %v851 = vpack.c.b16 %v651, %v643
    %v852 = vpack.c.b16 %v652, %v644
    %v853 = vpack.c.b16 %v653, %v645
    %v854 = vpack.c.b16 %v654, %v646
    %v855 = vpack.c.b16 %v655, %v647
    %v856 = vpack.c.b16 %v656, %v648
    %v857 = vpack.c.b16 %v665, %v657
    %v858 = vpack.c.b16 %v666, %v658
    %v859 = vpack.c.b16 %v667, %v659
    %v860 = vpack.c.b16 %v668, %v660
    %v861 = vpack.c.b16 %v669, %v661
    %v862 = vpack.c.b16 %v670, %v662
    %v863 = vpack.c.b16 %v671, %v663
    %v864 = vpack.c.b16 %v672, %v664
    %v865 = vpack.c.b16 %v681, %v673
    %v866 = vpack.c.b16 %v682, %v674
    %v867 = vpack.c.b16 %v683, %v675
    %v868 = vpack.c.b16 %v684, %v676
    %v869 = vpack.c.b16 %v685, %v677
    %v870 = vpack.c.b16 %v686, %v678
    %v871 = vpack.c.b16 %v687, %v679
    %v872 = vpack.c.b16 %v688, %v680
    %v873 = vpack.c.b16 %v697, %v689
    %v874 = vpack.c.b16 %v698, %v690
    %v875 = vpack.c.b16 %v699, %v691
    %v876 = vpack.c.b16 %v700, %v692
    %v877 = vpack.c.b16 %v701, %v693
    %v878 = vpack.c.b16 %v702, %v694
    %v879 = vpack.c.b16 %v703, %v695
    %v880 = vpack.c.b16 %v704, %v696
    %v881 = vpack.c.b16 %v713, %v705
    %v882 = vpack.c.b16 %v714, %v706
    %v883 = vpack.c.b16 %v715, %v707
    %v884 = vpack.c.b16 %v716, %v708
    %v885 = vpack.c.b16 %v717, %v709
    %v886 = vpack.c.b16 %v718, %v710
    %v887 = vpack.c.b16 %v719, %v711
    %v888 = vpack.c.b16 %v720, %v712
    %v889 = vpack.c.b16 %v729, %v721
    %v890 = vpack.c.b16 %v730, %v722
    %v891 = vpack.c.b16 %v731, %v723
    %v892 = vpack.c.b16 %v732, %v724
    %v893 = vpack.c.b16 %v733, %v725
    %v894 = vpack.c.b16 %v734, %v726
    %v895 = vpack.c.b16 %v735, %v727
    %v896 = vpack.c.b16 %v736, %v728
    %v897 = vpack.c.b16 %v745, %v737
    %v898 = vpack.c.b16 %v746, %v738
    %v899 = vpack.c.b16 %v747, %v739
    %v900 = vpack.c.b16 %v748, %v740
    %v901 = vpack.c.b16 %v749, %v741
    %v902 = vpack.c.b16 %v750, %v742
    %v903 = vpack.c.b16 %v751, %v743
    %v904 = vpack.c.b16 %v752, %v744
    %vm1049 = vcmask 359424
    %v1051 = vsel %vm1049, %v102, 0
    %vm1053 = vcmask 1045504
    %v1055 = vsel %vm1053, %v897, 0
    %v1058 = vsel %vm1053, %v898, 0
    %v1061 = vsel %vm1053, %v899, 0
    %v1064 = vsel %vm1053, %v900, 0
    %v1067 = vsel %vm1053, %v901, 0
    %v1070 = vsel %vm1053, %v902, 0
    %v1073 = vsel %vm1053, %v903, 0
    %v1076 = vsel %vm1053, %v904, 0
    %1078 = vmatprep.subr.bf16.mxu0 %v754
    %1079 = vmatpush1.bf16.msra.mxu0 %v753
    %1080 = vmatprep.subr.bf16.mxu0 %v762
    %1081 = vmatpush1.bf16.msra.mxu0 %v761
    %1082 = vmatprep.subr.bf16.mxu0 %v770
    %1083 = vmatpush1.bf16.msra.mxu0 %v769
    %1084 = vmatprep.subr.bf16.mxu0 %v778
    %1085 = vmatpush1.bf16.msra.mxu0 %v777
    %1086 = vmatprep.subr.bf16.mxu0 %v786
    %1087 = vmatpush1.bf16.msra.mxu0 %v785
    %1088 = vmatprep.subr.bf16.mxu0 %v794
    %1089 = vmatpush1.bf16.msra.mxu0 %v793
    %1090 = vmatprep.subr.bf16.mxu0 %v802
    %1091 = vmatpush1.bf16.msra.mxu0 %v801
    %1092 = vmatprep.subr.bf16.mxu0 %v810
    %1093 = vmatpush1.bf16.msra.mxu0 %v809
    %1094 = vmatprep.subr.bf16.mxu0 %v818
    %1095 = vmatpush1.bf16.msra.mxu0 %v817
    %1096 = vmatprep.subr.bf16.mxu0 %v826
    %1097 = vmatpush1.bf16.msra.mxu0 %v825
    %1098 = vmatprep.subr.bf16.mxu0 %v834
    %1099 = vmatpush1.bf16.msra.mxu0 %v833
    %1100 = vmatprep.subr.bf16.mxu0 %v842
    %1101 = vmatpush1.bf16.msra.mxu0 %v841
    %1102 = vmatprep.subr.bf16.mxu0 %v850
    %1103 = vmatpush1.bf16.msra.mxu0 %v849
    %1104 = vmatprep.subr.bf16.mxu0 %v858
    %1105 = vmatpush1.bf16.msra.mxu0 %v857
    %1106 = vmatprep.subr.bf16.mxu0 %v866
    %1107 = vmatpush1.bf16.msra.mxu0 %v865
    %1108 = vmatprep.subr.bf16.mxu0 %v874
    %1109 = vmatpush1.bf16.msra.mxu0 %v873
    %1110 = vmatprep.mubr.bf16.mxu0 %v101
    %1111 = vmatmul.mubr.bf16.gmra.mrb[0].mxu0 %v100
    %v1112 = vpop.f32.mrb[0].mxu0
    %v1113 = vadd.f32 %v260, %v1112
    %v1114 = vpop.f32.mrb[0].mxu0
    %v1115 = vadd.f32 %v264, %v1114
    %v1116 = vpop.f32.mrb[0].mxu0
    %v1117 = vadd.f32 %v260, %v1116
    %v1118 = vpop.f32.mrb[0].mxu0
    %v1119 = vadd.f32 %v264, %v1118
    %1120 = vdwg.mxu0
    %1121 = vmatprep.subr.bf16.mxu0 %v882
    %1122 = vmatpush1.bf16.msra.mxu0 %v881
    %1123 = vmatprep.subr.bf16.mxu0 %v890
    %1124 = vmatpush1.bf16.msra.mxu0 %v889
    %1125 = vmatprep.subr.bf16.mxu0 %v1058
    %1126 = vmatpush1.bf16.msra.mxu0 %v1055
    %1127 = vmatprep.subr.bf16.mxu0 0
    %1128 = vmatpush1.bf16.msra.mxu0 0
    %1129 = vmatprep.subr.bf16.mxu0 0
    %1130 = vmatpush1.bf16.msra.mxu0 0
    %1131 = vmatprep.subr.bf16.mxu0 0
    %1132 = vmatpush1.bf16.msra.mxu0 0
    %1133 = vmatprep.subr.bf16.mxu0 0
    %1134 = vmatpush1.bf16.msra.mxu0 0
    %1135 = vmatprep.subr.bf16.mxu0 0
    %1136 = vmatpush1.bf16.msra.mxu0 0
    %1137 = vmatprep.subr.bf16.mxu0 0
    %1138 = vmatpush1.bf16.msra.mxu0 0
    %1139 = vmatprep.subr.bf16.mxu0 0
    %1140 = vmatpush1.bf16.msra.mxu0 0
    %1141 = vmatprep.subr.bf16.mxu0 0
    %1142 = vmatpush1.bf16.msra.mxu0 0
    %1143 = vmatprep.subr.bf16.mxu0 0
    %1144 = vmatpush1.bf16.msra.mxu0 0
    %1145 = vmatprep.subr.bf16.mxu0 0
    %1146 = vmatpush1.bf16.msra.mxu0 0
    %1147 = vmatprep.subr.bf16.mxu0 0
    %1148 = vmatpush1.bf16.msra.mxu0 0
    %1149 = vmatprep.subr.bf16.mxu0 0
    %1150 = vmatpush1.bf16.msra.mxu0 0
    %1151 = vmatprep.subr.bf16.mxu0 0
    %1152 = vmatpush1.bf16.msra.mxu0 0
    %1153 = vmatprep.mubr.bf16.mxu0 0
    %1154 = vmatmul.mubr.bf16.gmra.mrb[0].mxu0 %v1051
    %v1155 = vpop.f32.mrb[0].mxu0
    %v1156 = vadd.f32 %v1113, %v1155
    %v1157 = vpop.f32.mrb[0].mxu0
    %v1158 = vadd.f32 %v1115, %v1157
    %v1159 = vpop.f32.mrb[0].mxu0
    %v1160 = vadd.f32 %v1117, %v1159
    %v1161 = vpop.f32.mrb[0].mxu0
    %v1162 = vadd.f32 %v1119, %v1161
    %1163 = vdwg.mxu0
    %1164 = vmatprep.subr.bf16.mxu0 %v756
    %1165 = vmatpush1.bf16.msra.mxu0 %v755
    %1166 = vmatprep.subr.bf16.mxu0 %v764
    %1167 = vmatpush1.bf16.msra.mxu0 %v763
    %1168 = vmatprep.subr.bf16.mxu0 %v772
    %1169 = vmatpush1.bf16.msra.mxu0 %v771
    %1170 = vmatprep.subr.bf16.mxu0 %v780
    %1171 = vmatpush1.bf16.msra.mxu0 %v779
    %1172 = vmatprep.subr.bf16.mxu0 %v788
    %1173 = vmatpush1.bf16.msra.mxu0 %v787
    %1174 = vmatprep.subr.bf16.mxu0 %v796
    %1175 = vmatpush1.bf16.msra.mxu0 %v795
    %1176 = vmatprep.subr.bf16.mxu0 %v804
    %1177 = vmatpush1.bf16.msra.mxu0 %v803
    %1178 = vmatprep.subr.bf16.mxu0 %v812
    %1179 = vmatpush1.bf16.msra.mxu0 %v811
    %1180 = vmatprep.subr.bf16.mxu0 %v820
    %1181 = vmatpush1.bf16.msra.mxu0 %v819
    %1182 = vmatprep.subr.bf16.mxu0 %v828
    %1183 = vmatpush1.bf16.msra.mxu0 %v827
    %1184 = vmatprep.subr.bf16.mxu0 %v836
    %1185 = vmatpush1.bf16.msra.mxu0 %v835
    %1186 = vmatprep.subr.bf16.mxu0 %v844
    %1187 = vmatpush1.bf16.msra.mxu0 %v843
    %1188 = vmatprep.subr.bf16.mxu0 %v852
    %1189 = vmatpush1.bf16.msra.mxu0 %v851
    %1190 = vmatprep.subr.bf16.mxu0 %v860
    %1191 = vmatpush1.bf16.msra.mxu0 %v859
    %1192 = vmatprep.subr.bf16.mxu0 %v868
    %1193 = vmatpush1.bf16.msra.mxu0 %v867
    %1194 = vmatprep.subr.bf16.mxu0 %v876
    %1195 = vmatpush1.bf16.msra.mxu0 %v875
    %1196 = vmatprep.mubr.bf16.mxu0 %v101
    %1197 = vmatmul.mubr.bf16.gmra.mrb[0].mxu0 %v100
    %v1198 = vpop.f32.mrb[0].mxu0
    %v1199 = vadd.f32 %v268, %v1198
    %v1200 = vpop.f32.mrb[0].mxu0
    %v1201 = vadd.f32 %v272, %v1200
    %v1202 = vpop.f32.mrb[0].mxu0
    %v1203 = vadd.f32 %v268, %v1202
    %v1204 = vpop.f32.mrb[0].mxu0
    %v1205 = vadd.f32 %v272, %v1204
    %1206 = vdwg.mxu0
    %1207 = vmatprep.subr.bf16.mxu0 %v884
    %1208 = vmatpush1.bf16.msra.mxu0 %v883
    %1209 = vmatprep.subr.bf16.mxu0 %v892
    %1210 = vmatpush1.bf16.msra.mxu0 %v891
    %1211 = vmatprep.subr.bf16.mxu0 %v1064
    %1212 = vmatpush1.bf16.msra.mxu0 %v1061
    %1213 = vmatprep.subr.bf16.mxu0 0
    %1214 = vmatpush1.bf16.msra.mxu0 0
    %1215 = vmatprep.subr.bf16.mxu0 0
    %1216 = vmatpush1.bf16.msra.mxu0 0
    %1217 = vmatprep.subr.bf16.mxu0 0
    %1218 = vmatpush1.bf16.msra.mxu0 0
    %1219 = vmatprep.subr.bf16.mxu0 0
    %1220 = vmatpush1.bf16.msra.mxu0 0
    %1221 = vmatprep.subr.bf16.mxu0 0
    %1222 = vmatpush1.bf16.msra.mxu0 0
    %1223 = vmatprep.subr.bf16.mxu0 0
    %1224 = vmatpush1.bf16.msra.mxu0 0
    %1225 = vmatprep.subr.bf16.mxu0 0
    %1226 = vmatpush1.bf16.msra.mxu0 0
    %1227 = vmatprep.subr.bf16.mxu0 0
    %1228 = vmatpush1.bf16.msra.mxu0 0
    %1229 = vmatprep.subr.bf16.mxu0 0
    %1230 = vmatpush1.bf16.msra.mxu0 0
    %1231 = vmatprep.subr.bf16.mxu0 0
    %1232 = vmatpush1.bf16.msra.mxu0 0
    %1233 = vmatprep.subr.bf16.mxu0 0
    %1234 = vmatpush1.bf16.msra.mxu0 0
    %1235 = vmatprep.subr.bf16.mxu0 0
    %1236 = vmatpush1.bf16.msra.mxu0 0
    %1237 = vmatprep.subr.bf16.mxu0 0
    %1238 = vmatpush1.bf16.msra.mxu0 0
    %1239 = vmatprep.mubr.bf16.mxu0 0
    %1240 = vmatmul.mubr.bf16.gmra.mrb[0].mxu0 %v1051
    %v1241 = vpop.f32.mrb[0].mxu0
    %v1242 = vadd.f32 %v1199, %v1241
    %v1243 = vpop.f32.mrb[0].mxu0
    %v1244 = vadd.f32 %v1201, %v1243
    %v1245 = vpop.f32.mrb[0].mxu0
    %v1246 = vadd.f32 %v1203, %v1245
    %v1247 = vpop.f32.mrb[0].mxu0
    %v1248 = vadd.f32 %v1205, %v1247
    %1249 = vdwg.mxu0
    %1250 = vmatprep.subr.bf16.mxu0 %v758
    %1251 = vmatpush1.bf16.msra.mxu0 %v757
    %1252 = vmatprep.subr.bf16.mxu0 %v766
    %1253 = vmatpush1.bf16.msra.mxu0 %v765
    %1254 = vmatprep.subr.bf16.mxu0 %v774
    %1255 = vmatpush1.bf16.msra.mxu0 %v773
    %1256 = vmatprep.subr.bf16.mxu0 %v782
    %1257 = vmatpush1.bf16.msra.mxu0 %v781
    %1258 = vmatprep.subr.bf16.mxu0 %v790
    %1259 = vmatpush1.bf16.msra.mxu0 %v789
    %1260 = vmatprep.subr.bf16.mxu0 %v798
    %1261 = vmatpush1.bf16.msra.mxu0 %v797
    %1262 = vmatprep.subr.bf16.mxu0 %v806
    %1263 = vmatpush1.bf16.msra.mxu0 %v805
    %1264 = vmatprep.subr.bf16.mxu0 %v814
    %1265 = vmatpush1.bf16.msra.mxu0 %v813
    %1266 = vmatprep.subr.bf16.mxu0 %v822
    %1267 = vmatpush1.bf16.msra.mxu0 %v821
    %1268 = vmatprep.subr.bf16.mxu0 %v830
    %1269 = vmatpush1.bf16.msra.mxu0 %v829
    %1270 = vmatprep.subr.bf16.mxu0 %v838
    %1271 = vmatpush1.bf16.msra.mxu0 %v837
    %1272 = vmatprep.subr.bf16.mxu0 %v846
    %1273 = vmatpush1.bf16.msra.mxu0 %v845
    %1274 = vmatprep.subr.bf16.mxu0 %v854
    %1275 = vmatpush1.bf16.msra.mxu0 %v853
    %1276 = vmatprep.subr.bf16.mxu0 %v862
    %1277 = vmatpush1.bf16.msra.mxu0 %v861
    %1278 = vmatprep.subr.bf16.mxu0 %v870
    %1279 = vmatpush1.bf16.msra.mxu0 %v869
    %1280 = vmatprep.subr.bf16.mxu0 %v878
    %1281 = vmatpush1.bf16.msra.mxu0 %v877
    %1282 = vmatprep.mubr.bf16.mxu0 %v101
    %1283 = vmatmul.mubr.bf16.gmra.mrb[0].mxu0 %v100
    %v1284 = vpop.f32.mrb[0].mxu0
    %v1285 = vadd.f32 %v276, %v1284
    %v1286 = vpop.f32.mrb[0].mxu0
    %v1287 = vadd.f32 %v280, %v1286
    %v1288 = vpop.f32.mrb[0].mxu0
    %v1289 = vadd.f32 %v276, %v1288
    %v1290 = vpop.f32.mrb[0].mxu0
    %v1291 = vadd.f32 %v280, %v1290
    %1292 = vdwg.mxu0
    %1293 = vmatprep.subr.bf16.mxu0 %v886
    %1294 = vmatpush1.bf16.msra.mxu0 %v885
    %1295 = vmatprep.subr.bf16.mxu0 %v894
    %1296 = vmatpush1.bf16.msra.mxu0 %v893
    %1297 = vmatprep.subr.bf16.mxu0 %v1070
    %1298 = vmatpush1.bf16.msra.mxu0 %v1067
    %1299 = vmatprep.subr.bf16.mxu0 0
    %1300 = vmatpush1.bf16.msra.mxu0 0
    %1301 = vmatprep.subr.bf16.mxu0 0
    %1302 = vmatpush1.bf16.msra.mxu0 0
    %1303 = vmatprep.subr.bf16.mxu0 0
    %1304 = vmatpush1.bf16.msra.mxu0 0
    %1305 = vmatprep.subr.bf16.mxu0 0
    %1306 = vmatpush1.bf16.msra.mxu0 0
    %1307 = vmatprep.subr.bf16.mxu0 0
    %1308 = vmatpush1.bf16.msra.mxu0 0
    %1309 = vmatprep.subr.bf16.mxu0 0
    %1310 = vmatpush1.bf16.msra.mxu0 0
    %1311 = vmatprep.subr.bf16.mxu0 0
    %1312 = vmatpush1.bf16.msra.mxu0 0
    %1313 = vmatprep.subr.bf16.mxu0 0
    %1314 = vmatpush1.bf16.msra.mxu0 0
    %1315 = vmatprep.subr.bf16.mxu0 0
    %1316 = vmatpush1.bf16.msra.mxu0 0
    %1317 = vmatprep.subr.bf16.mxu0 0
    %1318 = vmatpush1.bf16.msra.mxu0 0
    %1319 = vmatprep.subr.bf16.mxu0 0
    %1320 = vmatpush1.bf16.msra.mxu0 0
    %1321 = vmatprep.subr.bf16.mxu0 0
    %1322 = vmatpush1.bf16.msra.mxu0 0
    %1323 = vmatprep.subr.bf16.mxu0 0
    %1324 = vmatpush1.bf16.msra.mxu0 0
    %1325 = vmatprep.mubr.bf16.mxu0 0
    %1326 = vmatmul.mubr.bf16.gmra.mrb[0].mxu0 %v1051
    %v1327 = vpop.f32.mrb[0].mxu0
    %v1328 = vadd.f32 %v1285, %v1327
    %v1329 = vpop.f32.mrb[0].mxu0
    %v1330 = vadd.f32 %v1287, %v1329
    %v1331 = vpop.f32.mrb[0].mxu0
    %v1332 = vadd.f32 %v1289, %v1331
    %v1333 = vpop.f32.mrb[0].mxu0
    %v1334 = vadd.f32 %v1291, %v1333
    %1335 = vdwg.mxu0
    %1336 = vmatprep.subr.bf16.mxu0 %v760
    %1337 = vmatpush1.bf16.msra.mxu0 %v759
    %1338 = vmatprep.subr.bf16.mxu0 %v768
    %1339 = vmatpush1.bf16.msra.mxu0 %v767
    %1340 = vmatprep.subr.bf16.mxu0 %v776
    %1341 = vmatpush1.bf16.msra.mxu0 %v775
    %1342 = vmatprep.subr.bf16.mxu0 %v784
    %1343 = vmatpush1.bf16.msra.mxu0 %v783
    %1344 = vmatprep.subr.bf16.mxu0 %v792
    %1345 = vmatpush1.bf16.msra.mxu0 %v791
    %1346 = vmatprep.subr.bf16.mxu0 %v800
    %1347 = vmatpush1.bf16.msra.mxu0 %v799
    %1348 = vmatprep.subr.bf16.mxu0 %v808
    %1349 = vmatpush1.bf16.msra.mxu0 %v807
    %1350 = vmatprep.subr.bf16.mxu0 %v816
    %1351 = vmatpush1.bf16.msra.mxu0 %v815
    %1352 = vmatprep.subr.bf16.mxu0 %v824
    %1353 = vmatpush1.bf16.msra.mxu0 %v823
    %1354 = vmatprep.subr.bf16.mxu0 %v832
    %1355 = vmatpush1.bf16.msra.mxu0 %v831
    %1356 = vmatprep.subr.bf16.mxu0 %v840
    %1357 = vmatpush1.bf16.msra.mxu0 %v839
    %1358 = vmatprep.subr.bf16.mxu0 %v848
    %1359 = vmatpush1.bf16.msra.mxu0 %v847
    %1360 = vmatprep.subr.bf16.mxu0 %v856
    %1361 = vmatpush1.bf16.msra.mxu0 %v855
    %1362 = vmatprep.subr.bf16.mxu0 %v864
    %1363 = vmatpush1.bf16.msra.mxu0 %v863
    %1364 = vmatprep.subr.bf16.mxu0 %v872
    %1365 = vmatpush1.bf16.msra.mxu0 %v871
    %1366 = vmatprep.subr.bf16.mxu0 %v880
    %1367 = vmatpush1.bf16.msra.mxu0 %v879
    %1368 = vmatprep.mubr.bf16.mxu0 %v101
    %1369 = vmatmul.mubr.bf16.gmra.mrb[0].mxu0 %v100
    %v1370 = vpop.f32.mrb[0].mxu0
    %v1371 = vadd.f32 %v284, %v1370
    %v1372 = vpop.f32.mrb[0].mxu0
    %v1373 = vadd.f32 %v288, %v1372
    %v1374 = vpop.f32.mrb[0].mxu0
    %v1375 = vadd.f32 %v284, %v1374
    %v1376 = vpop.f32.mrb[0].mxu0
    %v1377 = vadd.f32 %v288, %v1376
    %1378 = vdwg.mxu0
    %1379 = vmatprep.subr.bf16.mxu0 %v888
    %1380 = vmatpush1.bf16.msra.mxu0 %v887
    %1381 = vmatprep.subr.bf16.mxu0 %v896
    %1382 = vmatpush1.bf16.msra.mxu0 %v895
    %1383 = vmatprep.subr.bf16.mxu0 %v1076
    %1384 = vmatpush1.bf16.msra.mxu0 %v1073
    %1385 = vmatprep.subr.bf16.mxu0 0
    %1386 = vmatpush1.bf16.msra.mxu0 0
    %1387 = vmatprep.subr.bf16.mxu0 0
    %1388 = vmatpush1.bf16.msra.mxu0 0
    %1389 = vmatprep.subr.bf16.mxu0 0
    %1390 = vmatpush1.bf16.msra.mxu0 0
    %1391 = vmatprep.subr.bf16.mxu0 0
    %1392 = vmatpush1.bf16.msra.mxu0 0
    %1393 = vmatprep.subr.bf16.mxu0 0
    %1394 = vmatpush1.bf16.msra.mxu0 0
    %1395 = vmatprep.subr.bf16.mxu0 0
    %1396 = vmatpush1.bf16.msra.mxu0 0
    %1397 = vmatprep.subr.bf16.mxu0 0
    %1398 = vmatpush1.bf16.msra.mxu0 0
    %1399 = vmatprep.subr.bf16.mxu0 0
    %1400 = vmatpush1.bf16.msra.mxu0 0
    %1401 = vmatprep.subr.bf16.mxu0 0
    %1402 = vmatpush1.bf16.msra.mxu0 0
    %1403 = vmatprep.subr.bf16.mxu0 0
    %1404 = vmatpush1.bf16.msra.mxu0 0
    %1405 = vmatprep.subr.bf16.mxu0 0
    %1406 = vmatpush1.bf16.msra.mxu0 0
    %1407 = vmatprep.subr.bf16.mxu0 0
    %1408 = vmatpush1.bf16.msra.mxu0 0
    %1409 = vmatprep.subr.bf16.mxu0 0
    %1410 = vmatpush1.bf16.msra.mxu0 0
    %1411 = vmatprep.mubr.bf16.mxu0 0
    %1412 = vmatmul.mubr.bf16.gmra.mrb[0].mxu0 %v1051
    %v1413 = vpop.f32.mrb[0].mxu0
    %v1414 = vadd.f32 %v1371, %v1413
    %v1415 = vpop.f32.mrb[0].mxu0
    %v1416 = vadd.f32 %v1373, %v1415
    %v1417 = vpop.f32.mrb[0].mxu0
    %v1418 = vadd.f32 %v1375, %v1417
    %v1419 = vpop.f32.mrb[0].mxu0
    %v1420 = vadd.f32 %v1377, %v1419
    %1421 = vdwg.mxu0
    %v1422 = vtanh.pop %v1156
    %v1423 = vtanh.pop %v1158
    %v1424 = vtanh.pop %v1242
    %v1425 = vtanh.pop %v1244
    %v1426 = vtanh.pop %v1328
    %v1427 = vtanh.pop %v1330
    %v1428 = vtanh.pop %v1414
    %v1429 = vtanh.pop %v1416
    %v1430 = vtanh.pop %v1160
    %v1431 = vtanh.pop %v1162
    %v1432 = vtanh.pop %v1246
    %v1433 = vtanh.pop %v1248
    %v1434 = vtanh.pop %v1332
    %v1435 = vtanh.pop %v1334
    %v1436 = vtanh.pop %v1418
    %v1437 = vtanh.pop %v1420
    %v1438 = vpack.c.bf16 %v1430, %v1422
    %v1439 = vpack.c.bf16 %v1431, %v1423
    %v1440 = vpack.c.bf16 %v1432, %v1424
    %v1441 = vpack.c.bf16 %v1433, %v1425
    %v1442 = vpack.c.bf16 %v1434, %v1426
    %v1443 = vpack.c.bf16 %v1435, %v1427
    %v1444 = vpack.c.bf16 %v1436, %v1428
    %v1445 = vpack.c.bf16 %v1437, %v1429
    %v1446 = vld [vmem:[#allocation8] sm:$0xff]
    %v1447 = vld [vmem:[#allocation8 + $0x8] sm:$0xff]
    %v1448 = vld [vmem:[#allocation8 + $0x10] sm:$0xff]
    %v1449 = vld [vmem:[#allocation8 + $0x18] sm:$0xff]
    %v1450 = vld [vmem:[#allocation8 + $0x20] sm:$0xff]
    %v1451 = vld [vmem:[#allocation8 + $0x28] sm:$0xff]
    %v1452 = vld [vmem:[#allocation8 + $0x30] sm:$0xff]
    %v1453 = vld [vmem:[#allocation8 + $0x38] sm:$0xff]
    %v1454 = vld [vmem:[#allocation8 + $0x40] sm:$0xff]
    %v1455 = vld [vmem:[#allocation8 + $0x48] sm:$0xff]
    %v1456 = vld [vmem:[#allocation8 + $0x50] sm:$0xff]
    %v1457 = vld [vmem:[#allocation8 + $0x58] sm:$0xff]
    %v1458 = vld [vmem:[#allocation8 + $0x60] sm:$0xff]
    %v1459 = vld [vmem:[#allocation8 + $0x68] sm:$0xff]
    %v1460 = vld [vmem:[#allocation8 + $0x70] sm:$0xff]
    %v1461 = vld [vmem:[#allocation8 + $0x78] sm:$0xff]
    %v1462 = vld [vmem:[#allocation8 + $0x80] sm:$0xff]
    %v1463 = vld [vmem:[#allocation8 + $0x88] sm:$0xff]
    %v1464 = vld [vmem:[#allocation8 + $0x90] sm:$0xff]
    %v1465 = vld [vmem:[#allocation8 + $0x98] sm:$0xff]
    %v1466 = vld [vmem:[#allocation8 + $0xa0] sm:$0xff]
    %v1467 = vld [vmem:[#allocation8 + $0xa8] sm:$0xff]
    %v1468 = vld [vmem:[#allocation8 + $0xb0] sm:$0xff]
    %v1469 = vld [vmem:[#allocation8 + $0xb8] sm:$0xff]
    %v1470 = vld [vmem:[#allocation8 + $0xc0] sm:$0xff]
    %v1471 = vld [vmem:[#allocation8 + $0xc8] sm:$0xff]
    %v1472 = vld [vmem:[#allocation8 + $0xd0] sm:$0xff]
    %v1473 = vld [vmem:[#allocation8 + $0xd8] sm:$0xff]
    %v1474 = vld [vmem:[#allocation8 + $0xe0] sm:$0xff]
    %v1475 = vld [vmem:[#allocation8 + $0xe8] sm:$0xff]
    %v1476 = vld [vmem:[#allocation8 + $0xf0] sm:$0xff]
    %v1477 = vld [vmem:[#allocation8 + $0xf8] sm:$0xff]
    %v1478 = vld [vmem:[#allocation8 + $0x100] sm:$0xff]
    %v1479 = vld [vmem:[#allocation8 + $0x108] sm:$0xff]
    %v1480 = vld [vmem:[#allocation8 + $0x110] sm:$0xff]
    %v1481 = vld [vmem:[#allocation8 + $0x118] sm:$0xff]
    %v1482 = vld [vmem:[#allocation8 + $0x120] sm:$0xff]
    %v1483 = vld [vmem:[#allocation8 + $0x128] sm:$0xff]
    %v1484 = vld [vmem:[#allocation8 + $0x130] sm:$0xff]
    %v1485 = vld [vmem:[#allocation8 + $0x138] sm:$0xff]
    %v1486 = vld [vmem:[#allocation8 + $0x140] sm:$0xff]
    %v1487 = vld [vmem:[#allocation8 + $0x148] sm:$0xff]
    %v1488 = vld [vmem:[#allocation8 + $0x150] sm:$0xff]
    %v1489 = vld [vmem:[#allocation8 + $0x158] sm:$0xff]
    %v1490 = vld [vmem:[#allocation8 + $0x160] sm:$0xff]
    %v1491 = vld [vmem:[#allocation8 + $0x168] sm:$0xff]
    %v1492 = vld [vmem:[#allocation8 + $0x170] sm:$0xff]
    %v1493 = vld [vmem:[#allocation8 + $0x178] sm:$0xff]
    %v1494 = vld [vmem:[#allocation8 + $0x180] sm:$0xff]
    %v1495 = vld [vmem:[#allocation8 + $0x188] sm:$0xff]
    %v1496 = vld [vmem:[#allocation8 + $0x190] sm:$0xff]
    %v1497 = vld [vmem:[#allocation8 + $0x198] sm:$0xff]
    %v1498 = vld [vmem:[#allocation8 + $0x1a0] sm:$0xff]
    %v1499 = vld [vmem:[#allocation8 + $0x1a8] sm:$0xff]
    %v1500 = vld [vmem:[#allocation8 + $0x1b0] sm:$0xff]
    %v1501 = vld [vmem:[#allocation8 + $0x1b8] sm:$0xff]
    %v1502 = vld [vmem:[#allocation8 + $0x1c0] sm:$0xff]
    %v1503 = vld [vmem:[#allocation8 + $0x1c8] sm:$0xff]
    %v1504 = vld [vmem:[#allocation8 + $0x1d0] sm:$0xff]
    %v1505 = vld [vmem:[#allocation8 + $0x1d8] sm:$0xff]
    %v1506 = vld [vmem:[#allocation8 + $0x1e0] sm:$0xff]
    %v1507 = vld [vmem:[#allocation8 + $0x1e8] sm:$0xff]
    %v1508 = vld [vmem:[#allocation8 + $0x1f0] sm:$0xff]
    %v1509 = vld [vmem:[#allocation8 + $0x1f8] sm:$0xff]
    %v1510 = vld [vmem:[#allocation8 + $0x200] sm:$0xff]
    %v1511 = vld [vmem:[#allocation8 + $0x208] sm:$0xff]
    %v1512 = vld [vmem:[#allocation8 + $0x210] sm:$0xff]
    %v1513 = vld [vmem:[#allocation8 + $0x218] sm:$0xff]
    %v1514 = vld [vmem:[#allocation8 + $0x220] sm:$0xff]
    %v1515 = vld [vmem:[#allocation8 + $0x228] sm:$0xff]
    %v1516 = vld [vmem:[#allocation8 + $0x230] sm:$0xff]
    %v1517 = vld [vmem:[#allocation8 + $0x238] sm:$0xff]
    %v1518 = vld [vmem:[#allocation8 + $0x240] sm:$0xff]
    %v1519 = vld [vmem:[#allocation8 + $0x248] sm:$0xff]
    %v1520 = vld [vmem:[#allocation8 + $0x250] sm:$0xff]
    %v1521 = vld [vmem:[#allocation8 + $0x258] sm:$0xff]
    %v1522 = vld [vmem:[#allocation8 + $0x260] sm:$0xff]
    %v1523 = vld [vmem:[#allocation8 + $0x268] sm:$0xff]
    %v1524 = vld [vmem:[#allocation8 + $0x270] sm:$0xff]
    %v1525 = vld [vmem:[#allocation8 + $0x278] sm:$0xff]
    %v1526 = vld [vmem:[#allocation8 + $0x280] sm:$0xff]
    %v1527 = vld [vmem:[#allocation8 + $0x288] sm:$0xff]
    %v1528 = vld [vmem:[#allocation8 + $0x290] sm:$0xff]
    %v1529 = vld [vmem:[#allocation8 + $0x298] sm:$0xff]
    %v1530 = vld [vmem:[#allocation8 + $0x2a0] sm:$0xff]
    %v1531 = vld [vmem:[#allocation8 + $0x2a8] sm:$0xff]
    %v1532 = vld [vmem:[#allocation8 + $0x2b0] sm:$0xff]
    %v1533 = vld [vmem:[#allocation8 + $0x2b8] sm:$0xff]
    %v1534 = vld [vmem:[#allocation8 + $0x2c0] sm:$0xff]
    %v1535 = vld [vmem:[#allocation8 + $0x2c8] sm:$0xff]
    %v1536 = vld [vmem:[#allocation8 + $0x2d0] sm:$0xff]
    %v1537 = vld [vmem:[#allocation8 + $0x2d8] sm:$0xff]
    %v1538 = vld [vmem:[#allocation8 + $0x2e0] sm:$0xff]
    %v1539 = vld [vmem:[#allocation8 + $0x2e8] sm:$0xff]
    %v1540 = vld [vmem:[#allocation8 + $0x2f0] sm:$0xff]
    %v1541 = vld [vmem:[#allocation8 + $0x2f8] sm:$0xff]
    %v1542 = vld [vmem:[#allocation8 + $0x300] sm:$0xff]
    %v1543 = vld [vmem:[#allocation8 + $0x308] sm:$0xff]
    %v1544 = vld [vmem:[#allocation8 + $0x310] sm:$0xff]
    %v1545 = vld [vmem:[#allocation8 + $0x318] sm:$0xff]
    %v1546 = vld [vmem:[#allocation8 + $0x320] sm:$0xff]
    %v1547 = vld [vmem:[#allocation8 + $0x328] sm:$0xff]
    %v1548 = vld [vmem:[#allocation8 + $0x330] sm:$0xff]
    %v1549 = vld [vmem:[#allocation8 + $0x338] sm:$0xff]
    %v1550 = vld [vmem:[#allocation8 + $0x340] sm:$0xff]
    %v1551 = vld [vmem:[#allocation8 + $0x348] sm:$0xff]
    %v1552 = vld [vmem:[#allocation8 + $0x350] sm:$0xff]
    %v1553 = vld [vmem:[#allocation8 + $0x358] sm:$0xff]
    %v1554 = vld [vmem:[#allocation8 + $0x360] sm:$0xff]
    %v1555 = vld [vmem:[#allocation8 + $0x368] sm:$0xff]
    %v1556 = vld [vmem:[#allocation8 + $0x370] sm:$0xff]
    %v1557 = vld [vmem:[#allocation8 + $0x378] sm:$0xff]
    %v1558 = vld [vmem:[#allocation8 + $0x380] sm:$0xff]
    %v1559 = vld [vmem:[#allocation8 + $0x388] sm:$0xff]
    %v1560 = vld [vmem:[#allocation8 + $0x390] sm:$0xff]
    %v1561 = vld [vmem:[#allocation8 + $0x398] sm:$0xff]
    %v1562 = vld [vmem:[#allocation8 + $0x3a0] sm:$0xff]
    %v1563 = vld [vmem:[#allocation8 + $0x3a8] sm:$0xff]
    %v1564 = vld [vmem:[#allocation8 + $0x3b0] sm:$0xff]
    %v1565 = vld [vmem:[#allocation8 + $0x3b8] sm:$0xff]
    %v1566 = vld [vmem:[#allocation8 + $0x3c0] sm:$0xff]
    %v1567 = vld [vmem:[#allocation8 + $0x3c8] sm:$0xff]
    %v1568 = vld [vmem:[#allocation8 + $0x3d0] sm:$0xff]
    %v1569 = vld [vmem:[#allocation8 + $0x3d8] sm:$0xff]
    %v1570 = vld [vmem:[#allocation8 + $0x3e0] sm:$0xff]
    %v1571 = vld [vmem:[#allocation8 + $0x3e8] sm:$0xff]
    %v1572 = vld [vmem:[#allocation8 + $0x3f0] sm:$0xff]
    %v1573 = vld [vmem:[#allocation8 + $0x3f8] sm:$0xff]
    %v1574 = vld [vmem:[%s4] sm:$0x3]
    %v1576 = vlaneseq
    %v1577 = vshrl.u32 %v1576, 7
    %v1578 = vsub.s32 0, %v1577
    %v1579 = vrot.slane %v1574, %v1578
    %v1580 = vlaneseq
    %v1581 = vshrl.u32 %v1580, 7
    %v1582 = vsub.s32 1, %v1581
    %v1583 = vrot.slane %v1574, %v1582
    %v1714 = vunpack.c.l.b16 %v1446
    %v1715 = vunpack.c.h.b16 %v1446
    %v1716 = vunpack.c.l.b16 %v1447
    %v1717 = vunpack.c.h.b16 %v1447
    %v1718 = vunpack.c.l.b16 %v1448
    %v1719 = vunpack.c.h.b16 %v1448
    %v1720 = vunpack.c.l.b16 %v1449
    %v1721 = vunpack.c.h.b16 %v1449
    %v1722 = vunpack.c.l.b16 %v1450
    %v1723 = vunpack.c.h.b16 %v1450
    %v1724 = vunpack.c.l.b16 %v1451
    %v1725 = vunpack.c.h.b16 %v1451
    %v1726 = vunpack.c.l.b16 %v1452
    %v1727 = vunpack.c.h.b16 %v1452
    %v1728 = vunpack.c.l.b16 %v1453
    %v1729 = vunpack.c.h.b16 %v1453
    %v1730 = vunpack.c.l.b16 %v1454
    %v1731 = vunpack.c.h.b16 %v1454
    %v1732 = vunpack.c.l.b16 %v1455
    %v1733 = vunpack.c.h.b16 %v1455
    %v1734 = vunpack.c.l.b16 %v1456
    %v1735 = vunpack.c.h.b16 %v1456
    %v1736 = vunpack.c.l.b16 %v1457
    %v1737 = vunpack.c.h.b16 %v1457
    %v1738 = vunpack.c.l.b16 %v1458
    %v1739 = vunpack.c.h.b16 %v1458
    %v1740 = vunpack.c.l.b16 %v1459
    %v1741 = vunpack.c.h.b16 %v1459
    %v1742 = vunpack.c.l.b16 %v1460
    %v1743 = vunpack.c.h.b16 %v1460
    %v1744 = vunpack.c.l.b16 %v1461
    %v1745 = vunpack.c.h.b16 %v1461
    %v1746 = vunpack.c.l.b16 %v1462
    %v1747 = vunpack.c.h.b16 %v1462
    %v1748 = vunpack.c.l.b16 %v1463
    %v1749 = vunpack.c.h.b16 %v1463
    %v1750 = vunpack.c.l.b16 %v1464
    %v1751 = vunpack.c.h.b16 %v1464
    %v1752 = vunpack.c.l.b16 %v1465
    %v1753 = vunpack.c.h.b16 %v1465
    %v1754 = vunpack.c.l.b16 %v1466
    %v1755 = vunpack.c.h.b16 %v1466
    %v1756 = vunpack.c.l.b16 %v1467
    %v1757 = vunpack.c.h.b16 %v1467
    %v1758 = vunpack.c.l.b16 %v1468
    %v1759 = vunpack.c.h.b16 %v1468
    %v1760 = vunpack.c.l.b16 %v1469
    %v1761 = vunpack.c.h.b16 %v1469
    %v1762 = vunpack.c.l.b16 %v1470
    %v1763 = vunpack.c.h.b16 %v1470
    %v1764 = vunpack.c.l.b16 %v1471
    %v1765 = vunpack.c.h.b16 %v1471
    %v1766 = vunpack.c.l.b16 %v1472
    %v1767 = vunpack.c.h.b16 %v1472
    %v1768 = vunpack.c.l.b16 %v1473
    %v1769 = vunpack.c.h.b16 %v1473
    %v1770 = vunpack.c.l.b16 %v1474
    %v1771 = vunpack.c.h.b16 %v1474
    %v1772 = vunpack.c.l.b16 %v1475
    %v1773 = vunpack.c.h.b16 %v1475
    %v1774 = vunpack.c.l.b16 %v1476
    %v1775 = vunpack.c.h.b16 %v1476
    %v1776 = vunpack.c.l.b16 %v1477
    %v1777 = vunpack.c.h.b16 %v1477
    %v1778 = vunpack.c.l.b16 %v1478
    %v1779 = vunpack.c.h.b16 %v1478
    %v1780 = vunpack.c.l.b16 %v1479
    %v1781 = vunpack.c.h.b16 %v1479
    %v1782 = vunpack.c.l.b16 %v1480
    %v1783 = vunpack.c.h.b16 %v1480
    %v1784 = vunpack.c.l.b16 %v1481
    %v1785 = vunpack.c.h.b16 %v1481
    %v1786 = vunpack.c.l.b16 %v1482
    %v1787 = vunpack.c.h.b16 %v1482
    %v1788 = vunpack.c.l.b16 %v1483
    %v1789 = vunpack.c.h.b16 %v1483
    %v1790 = vunpack.c.l.b16 %v1484
    %v1791 = vunpack.c.h.b16 %v1484
    %v1792 = vunpack.c.l.b16 %v1485
    %v1793 = vunpack.c.h.b16 %v1485
    %v1794 = vunpack.c.l.b16 %v1486
    %v1795 = vunpack.c.h.b16 %v1486
    %v1796 = vunpack.c.l.b16 %v1487
    %v1797 = vunpack.c.h.b16 %v1487
    %v1798 = vunpack.c.l.b16 %v1488
    %v1799 = vunpack.c.h.b16 %v1488
    %v1800 = vunpack.c.l.b16 %v1489
    %v1801 = vunpack.c.h.b16 %v1489
    %v1802 = vunpack.c.l.b16 %v1490
    %v1803 = vunpack.c.h.b16 %v1490
    %v1804 = vunpack.c.l.b16 %v1491
    %v1805 = vunpack.c.h.b16 %v1491
    %v1806 = vunpack.c.l.b16 %v1492
    %v1807 = vunpack.c.h.b16 %v1492
    %v1808 = vunpack.c.l.b16 %v1493
    %v1809 = vunpack.c.h.b16 %v1493
    %v1810 = vunpack.c.l.b16 %v1494
    %v1811 = vunpack.c.h.b16 %v1494
    %v1812 = vunpack.c.l.b16 %v1495
    %v1813 = vunpack.c.h.b16 %v1495
    %v1814 = vunpack.c.l.b16 %v1496
    %v1815 = vunpack.c.h.b16 %v1496
    %v1816 = vunpack.c.l.b16 %v1497
    %v1817 = vunpack.c.h.b16 %v1497
    %v1818 = vunpack.c.l.b16 %v1498
    %v1819 = vunpack.c.h.b16 %v1498
    %v1820 = vunpack.c.l.b16 %v1499
    %v1821 = vunpack.c.h.b16 %v1499
    %v1822 = vunpack.c.l.b16 %v1500
    %v1823 = vunpack.c.h.b16 %v1500
    %v1824 = vunpack.c.l.b16 %v1501
    %v1825 = vunpack.c.h.b16 %v1501
    %v1826 = vunpack.c.l.b16 %v1502
    %v1827 = vunpack.c.h.b16 %v1502
    %v1828 = vunpack.c.l.b16 %v1503
    %v1829 = vunpack.c.h.b16 %v1503
    %v1830 = vunpack.c.l.b16 %v1504
    %v1831 = vunpack.c.h.b16 %v1504
    %v1832 = vunpack.c.l.b16 %v1505
    %v1833 = vunpack.c.h.b16 %v1505
    %v1834 = vunpack.c.l.b16 %v1506
    %v1835 = vunpack.c.h.b16 %v1506
    %v1836 = vunpack.c.l.b16 %v1507
    %v1837 = vunpack.c.h.b16 %v1507
    %v1838 = vunpack.c.l.b16 %v1508
    %v1839 = vunpack.c.h.b16 %v1508
    %v1840 = vunpack.c.l.b16 %v1509
    %v1841 = vunpack.c.h.b16 %v1509
    %v1842 = vunpack.c.l.b16 %v1510
    %v1843 = vunpack.c.h.b16 %v1510
    %v1844 = vunpack.c.l.b16 %v1511
    %v1845 = vunpack.c.h.b16 %v1511
    %v1846 = vunpack.c.l.b16 %v1512
    %v1847 = vunpack.c.h.b16 %v1512
    %v1848 = vunpack.c.l.b16 %v1513
    %v1849 = vunpack.c.h.b16 %v1513
    %v1850 = vunpack.c.l.b16 %v1514
    %v1851 = vunpack.c.h.b16 %v1514
    %v1852 = vunpack.c.l.b16 %v1515
    %v1853 = vunpack.c.h.b16 %v1515
    %v1854 = vunpack.c.l.b16 %v1516
    %v1855 = vunpack.c.h.b16 %v1516
    %v1856 = vunpack.c.l.b16 %v1517
    %v1857 = vunpack.c.h.b16 %v1517
    %v1858 = vunpack.c.l.b16 %v1518
    %v1859 = vunpack.c.h.b16 %v1518
    %v1860 = vunpack.c.l.b16 %v1519
    %v1861 = vunpack.c.h.b16 %v1519
    %v1862 = vunpack.c.l.b16 %v1520
    %v1863 = vunpack.c.h.b16 %v1520
    %v1864 = vunpack.c.l.b16 %v1521
    %v1865 = vunpack.c.h.b16 %v1521
    %v1866 = vunpack.c.l.b16 %v1522
    %v1867 = vunpack.c.h.b16 %v1522
    %v1868 = vunpack.c.l.b16 %v1523
    %v1869 = vunpack.c.h.b16 %v1523
    %v1870 = vunpack.c.l.b16 %v1524
    %v1871 = vunpack.c.h.b16 %v1524
    %v1872 = vunpack.c.l.b16 %v1525
    %v1873 = vunpack.c.h.b16 %v1525
    %v1874 = vunpack.c.l.b16 %v1526
    %v1875 = vunpack.c.h.b16 %v1526
    %v1876 = vunpack.c.l.b16 %v1527
    %v1877 = vunpack.c.h.b16 %v1527
    %v1878 = vunpack.c.l.b16 %v1528
    %v1879 = vunpack.c.h.b16 %v1528
    %v1880 = vunpack.c.l.b16 %v1529
    %v1881 = vunpack.c.h.b16 %v1529
    %v1882 = vunpack.c.l.b16 %v1530
    %v1883 = vunpack.c.h.b16 %v1530
    %v1884 = vunpack.c.l.b16 %v1531
    %v1885 = vunpack.c.h.b16 %v1531
    %v1886 = vunpack.c.l.b16 %v1532
    %v1887 = vunpack.c.h.b16 %v1532
    %v1888 = vunpack.c.l.b16 %v1533
    %v1889 = vunpack.c.h.b16 %v1533
    %v1890 = vunpack.c.l.b16 %v1534
    %v1891 = vunpack.c.h.b16 %v1534
    %v1892 = vunpack.c.l.b16 %v1535
    %v1893 = vunpack.c.h.b16 %v1535
    %v1894 = vunpack.c.l.b16 %v1536
    %v1895 = vunpack.c.h.b16 %v1536
    %v1896 = vunpack.c.l.b16 %v1537
    %v1897 = vunpack.c.h.b16 %v1537
    %v1898 = vunpack.c.l.b16 %v1538
    %v1899 = vunpack.c.h.b16 %v1538
    %v1900 = vunpack.c.l.b16 %v1539
    %v1901 = vunpack.c.h.b16 %v1539
    %v1902 = vunpack.c.l.b16 %v1540
    %v1903 = vunpack.c.h.b16 %v1540
    %v1904 = vunpack.c.l.b16 %v1541
    %v1905 = vunpack.c.h.b16 %v1541
    %v1906 = vunpack.c.l.b16 %v1542
    %v1907 = vunpack.c.h.b16 %v1542
    %v1908 = vunpack.c.l.b16 %v1543
    %v1909 = vunpack.c.h.b16 %v1543
    %v1910 = vunpack.c.l.b16 %v1544
    %v1911 = vunpack.c.h.b16 %v1544
    %v1912 = vunpack.c.l.b16 %v1545
    %v1913 = vunpack.c.h.b16 %v1545
    %v1914 = vunpack.c.l.b16 %v1546
    %v1915 = vunpack.c.h.b16 %v1546
    %v1916 = vunpack.c.l.b16 %v1547
    %v1917 = vunpack.c.h.b16 %v1547
    %v1918 = vunpack.c.l.b16 %v1548
    %v1919 = vunpack.c.h.b16 %v1548
    %v1920 = vunpack.c.l.b16 %v1549
    %v1921 = vunpack.c.h.b16 %v1549
    %v1922 = vunpack.c.l.b16 %v1550
    %v1923 = vunpack.c.h.b16 %v1550
    %v1924 = vunpack.c.l.b16 %v1551
    %v1925 = vunpack.c.h.b16 %v1551
    %v1926 = vunpack.c.l.b16 %v1552
    %v1927 = vunpack.c.h.b16 %v1552
    %v1928 = vunpack.c.l.b16 %v1553
    %v1929 = vunpack.c.h.b16 %v1553
    %v1930 = vunpack.c.l.b16 %v1554
    %v1931 = vunpack.c.h.b16 %v1554
    %v1932 = vunpack.c.l.b16 %v1555
    %v1933 = vunpack.c.h.b16 %v1555
    %v1934 = vunpack.c.l.b16 %v1556
    %v1935 = vunpack.c.h.b16 %v1556
    %v1936 = vunpack.c.l.b16 %v1557
    %v1937 = vunpack.c.h.b16 %v1557
    %v1938 = vunpack.c.l.b16 %v1558
    %v1939 = vunpack.c.h.b16 %v1558
    %v1940 = vunpack.c.l.b16 %v1559
    %v1941 = vunpack.c.h.b16 %v1559
    %v1942 = vunpack.c.l.b16 %v1560
    %v1943 = vunpack.c.h.b16 %v1560
    %v1944 = vunpack.c.l.b16 %v1561
    %v1945 = vunpack.c.h.b16 %v1561
    %v1946 = vunpack.c.l.b16 %v1562
    %v1947 = vunpack.c.h.b16 %v1562
    %v1948 = vunpack.c.l.b16 %v1563
    %v1949 = vunpack.c.h.b16 %v1563
    %v1950 = vunpack.c.l.b16 %v1564
    %v1951 = vunpack.c.h.b16 %v1564
    %v1952 = vunpack.c.l.b16 %v1565
    %v1953 = vunpack.c.h.b16 %v1565
    %v1954 = vunpack.c.l.b16 %v1566
    %v1955 = vunpack.c.h.b16 %v1566
    %v1956 = vunpack.c.l.b16 %v1567
    %v1957 = vunpack.c.h.b16 %v1567
    %v1958 = vunpack.c.l.b16 %v1568
    %v1959 = vunpack.c.h.b16 %v1568
    %v1960 = vunpack.c.l.b16 %v1569
    %v1961 = vunpack.c.h.b16 %v1569
    %v1962 = vunpack.c.l.b16 %v1570
    %v1963 = vunpack.c.h.b16 %v1570
    %v1964 = vunpack.c.l.b16 %v1571
    %v1965 = vunpack.c.h.b16 %v1571
    %v1966 = vunpack.c.l.b16 %v1572
    %v1967 = vunpack.c.h.b16 %v1572
    %v1968 = vunpack.c.l.b16 %v1573
    %v1969 = vunpack.c.h.b16 %v1573
    %v1970 = vpack.c.b16 %v1716, %v1714
    %v1971 = vpack.c.b16 %v1717, %v1715
    %v1972 = vpack.c.b16 %v1720, %v1718
    %v1973 = vpack.c.b16 %v1721, %v1719
    %v1974 = vpack.c.b16 %v1724, %v1722
    %v1975 = vpack.c.b16 %v1725, %v1723
    %v1976 = vpack.c.b16 %v1728, %v1726
    %v1977 = vpack.c.b16 %v1729, %v1727
    %v1978 = vpack.c.b16 %v1732, %v1730
    %v1979 = vpack.c.b16 %v1733, %v1731
    %v1980 = vpack.c.b16 %v1736, %v1734
    %v1981 = vpack.c.b16 %v1737, %v1735
    %v1982 = vpack.c.b16 %v1740, %v1738
    %v1983 = vpack.c.b16 %v1741, %v1739
    %v1984 = vpack.c.b16 %v1744, %v1742
    %v1985 = vpack.c.b16 %v1745, %v1743
    %v1986 = vpack.c.b16 %v1748, %v1746
    %v1987 = vpack.c.b16 %v1749, %v1747
    %v1988 = vpack.c.b16 %v1752, %v1750
    %v1989 = vpack.c.b16 %v1753, %v1751
    %v1990 = vpack.c.b16 %v1756, %v1754
    %v1991 = vpack.c.b16 %v1757, %v1755
    %v1992 = vpack.c.b16 %v1760, %v1758
    %v1993 = vpack.c.b16 %v1761, %v1759
    %v1994 = vpack.c.b16 %v1764, %v1762
    %v1995 = vpack.c.b16 %v1765, %v1763
    %v1996 = vpack.c.b16 %v1768, %v1766
    %v1997 = vpack.c.b16 %v1769, %v1767
    %v1998 = vpack.c.b16 %v1772, %v1770
    %v1999 = vpack.c.b16 %v1773, %v1771
    %v2000 = vpack.c.b16 %v1776, %v1774
    %v2001 = vpack.c.b16 %v1777, %v1775
    %v2002 = vpack.c.b16 %v1780, %v1778
    %v2003 = vpack.c.b16 %v1781, %v1779
    %v2004 = vpack.c.b16 %v1784, %v1782
    %v2005 = vpack.c.b16 %v1785, %v1783
    %v2006 = vpack.c.b16 %v1788, %v1786
    %v2007 = vpack.c.b16 %v1789, %v1787
    %v2008 = vpack.c.b16 %v1792, %v1790
    %v2009 = vpack.c.b16 %v1793, %v1791
    %v2010 = vpack.c.b16 %v1796, %v1794
    %v2011 = vpack.c.b16 %v1797, %v1795
    %v2012 = vpack.c.b16 %v1800, %v1798
    %v2013 = vpack.c.b16 %v1801, %v1799
    %v2014 = vpack.c.b16 %v1804, %v1802
    %v2015 = vpack.c.b16 %v1805, %v1803
    %v2016 = vpack.c.b16 %v1808, %v1806
    %v2017 = vpack.c.b16 %v1809, %v1807
    %v2018 = vpack.c.b16 %v1812, %v1810
    %v2019 = vpack.c.b16 %v1813, %v1811
    %v2020 = vpack.c.b16 %v1816, %v1814
    %v2021 = vpack.c.b16 %v1817, %v1815
    %v2022 = vpack.c.b16 %v1820, %v1818
    %v2023 = vpack.c.b16 %v1821, %v1819
    %v2024 = vpack.c.b16 %v1824, %v1822
    %v2025 = vpack.c.b16 %v1825, %v1823
    %v2026 = vpack.c.b16 %v1828, %v1826
    %v2027 = vpack.c.b16 %v1829, %v1827
    %v2028 = vpack.c.b16 %v1832, %v1830
    %v2029 = vpack.c.b16 %v1833, %v1831
    %v2030 = vpack.c.b16 %v1836, %v1834
    %v2031 = vpack.c.b16 %v1837, %v1835
    %v2032 = vpack.c.b16 %v1840, %v1838
    %v2033 = vpack.c.b16 %v1841, %v1839
    %v2034 = vpack.c.b16 %v1844, %v1842
    %v2035 = vpack.c.b16 %v1845, %v1843
    %v2036 = vpack.c.b16 %v1848, %v1846
    %v2037 = vpack.c.b16 %v1849, %v1847
    %v2038 = vpack.c.b16 %v1852, %v1850
    %v2039 = vpack.c.b16 %v1853, %v1851
    %v2040 = vpack.c.b16 %v1856, %v1854
    %v2041 = vpack.c.b16 %v1857, %v1855
    %v2042 = vpack.c.b16 %v1860, %v1858
    %v2043 = vpack.c.b16 %v1861, %v1859
    %v2044 = vpack.c.b16 %v1864, %v1862
    %v2045 = vpack.c.b16 %v1865, %v1863
    %v2046 = vpack.c.b16 %v1868, %v1866
    %v2047 = vpack.c.b16 %v1869, %v1867
    %v2048 = vpack.c.b16 %v1872, %v1870
    %v2049 = vpack.c.b16 %v1873, %v1871
    %v2050 = vpack.c.b16 %v1876, %v1874
    %v2051 = vpack.c.b16 %v1877, %v1875
    %v2052 = vpack.c.b16 %v1880, %v1878
    %v2053 = vpack.c.b16 %v1881, %v1879
    %v2054 = vpack.c.b16 %v1884, %v1882
    %v2055 = vpack.c.b16 %v1885, %v1883
    %v2056 = vpack.c.b16 %v1888, %v1886
    %v2057 = vpack.c.b16 %v1889, %v1887
    %v2058 = vpack.c.b16 %v1892, %v1890
    %v2059 = vpack.c.b16 %v1893, %v1891
    %v2060 = vpack.c.b16 %v1896, %v1894
    %v2061 = vpack.c.b16 %v1897, %v1895
    %v2062 = vpack.c.b16 %v1900, %v1898
    %v2063 = vpack.c.b16 %v1901, %v1899
    %v2064 = vpack.c.b16 %v1904, %v1902
    %v2065 = vpack.c.b16 %v1905, %v1903
    %v2066 = vpack.c.b16 %v1908, %v1906
    %v2067 = vpack.c.b16 %v1909, %v1907
    %v2068 = vpack.c.b16 %v1912, %v1910
    %v2069 = vpack.c.b16 %v1913, %v1911
    %v2070 = vpack.c.b16 %v1916, %v1914
    %v2071 = vpack.c.b16 %v1917, %v1915
    %v2072 = vpack.c.b16 %v1920, %v1918
    %v2073 = vpack.c.b16 %v1921, %v1919
    %v2074 = vpack.c.b16 %v1924, %v1922
    %v2075 = vpack.c.b16 %v1925, %v1923
    %v2076 = vpack.c.b16 %v1928, %v1926
    %v2077 = vpack.c.b16 %v1929, %v1927
    %v2078 = vpack.c.b16 %v1932, %v1930
    %v2079 = vpack.c.b16 %v1933, %v1931
    %v2080 = vpack.c.b16 %v1936, %v1934
    %v2081 = vpack.c.b16 %v1937, %v1935
    %v2082 = vpack.c.b16 %v1940, %v1938
    %v2083 = vpack.c.b16 %v1941, %v1939
    %v2084 = vpack.c.b16 %v1944, %v1942
    %v2085 = vpack.c.b16 %v1945, %v1943
    %v2086 = vpack.c.b16 %v1948, %v1946
    %v2087 = vpack.c.b16 %v1949, %v1947
    %v2088 = vpack.c.b16 %v1952, %v1950
    %v2089 = vpack.c.b16 %v1953, %v1951
    %v2090 = vpack.c.b16 %v1956, %v1954
    %v2091 = vpack.c.b16 %v1957, %v1955
    %v2092 = vpack.c.b16 %v1960, %v1958
    %v2093 = vpack.c.b16 %v1961, %v1959
    %v2094 = vpack.c.b16 %v1964, %v1962
    %v2095 = vpack.c.b16 %v1965, %v1963
    %v2096 = vpack.c.b16 %v1968, %v1966
    %v2097 = vpack.c.b16 %v1969, %v1967
    %2226 = vmatprep.subr.bf16.mxu0 %v1971
    %2227 = vmatpush1.bf16.msra.mxu0 %v1970
    %2228 = vmatprep.subr.bf16.mxu0 %v1973
    %2229 = vmatpush1.bf16.msra.mxu0 %v1972
    %2230 = vmatprep.subr.bf16.mxu0 %v1975
    %2231 = vmatpush1.bf16.msra.mxu0 %v1974
    %2232 = vmatprep.subr.bf16.mxu0 %v1977
    %2233 = vmatpush1.bf16.msra.mxu0 %v1976
    %2234 = vmatprep.subr.bf16.mxu0 %v1979
    %2235 = vmatpush1.bf16.msra.mxu0 %v1978
    %2236 = vmatprep.subr.bf16.mxu0 %v1981
    %2237 = vmatpush1.bf16.msra.mxu0 %v1980
    %2238 = vmatprep.subr.bf16.mxu0 %v1983
    %2239 = vmatpush1.bf16.msra.mxu0 %v1982
    %2240 = vmatprep.subr.bf16.mxu0 %v1985
    %2241 = vmatpush1.bf16.msra.mxu0 %v1984
    %2242 = vmatprep.subr.bf16.mxu0 %v1987
    %2243 = vmatpush1.bf16.msra.mxu0 %v1986
    %2244 = vmatprep.subr.bf16.mxu0 %v1989
    %2245 = vmatpush1.bf16.msra.mxu0 %v1988
    %2246 = vmatprep.subr.bf16.mxu0 %v1991
    %2247 = vmatpush1.bf16.msra.mxu0 %v1990
    %2248 = vmatprep.subr.bf16.mxu0 %v1993
    %2249 = vmatpush1.bf16.msra.mxu0 %v1992
    %2250 = vmatprep.subr.bf16.mxu0 %v1995
    %2251 = vmatpush1.bf16.msra.mxu0 %v1994
    %2252 = vmatprep.subr.bf16.mxu0 %v1997
    %2253 = vmatpush1.bf16.msra.mxu0 %v1996
    %2254 = vmatprep.subr.bf16.mxu0 %v1999
    %2255 = vmatpush1.bf16.msra.mxu0 %v1998
    %2256 = vmatprep.subr.bf16.mxu0 %v2001
    %2257 = vmatpush1.bf16.msra.mxu0 %v2000
    %2258 = vmatprep.mubr.bf16.mxu0 %v1439
    %2259 = vmatmul.mubr.bf16.gmra.mrb[0].mxu0 %v1438
    %v2260 = vpop.f32.mrb[0].mxu0
    %v2261 = vadd.f32 %v1579, %v2260
    %v2262 = vpop.f32.mrb[0].mxu0
    %v2263 = vadd.f32 %v1583, %v2262
    %v2264 = vpop.f32.mrb[0].mxu0
    %v2265 = vadd.f32 %v1579, %v2264
    %v2266 = vpop.f32.mrb[0].mxu0
    %v2267 = vadd.f32 %v1583, %v2266
    %2268 = vdwg.mxu0
    %2269 = vmatprep.subr.bf16.mxu0 %v2003
    %2270 = vmatpush1.bf16.msra.mxu0 %v2002
    %2271 = vmatprep.subr.bf16.mxu0 %v2005
    %2272 = vmatpush1.bf16.msra.mxu0 %v2004
    %2273 = vmatprep.subr.bf16.mxu0 %v2007
    %2274 = vmatpush1.bf16.msra.mxu0 %v2006
    %2275 = vmatprep.subr.bf16.mxu0 %v2009
    %2276 = vmatpush1.bf16.msra.mxu0 %v2008
    %2277 = vmatprep.subr.bf16.mxu0 %v2011
    %2278 = vmatpush1.bf16.msra.mxu0 %v2010
    %2279 = vmatprep.subr.bf16.mxu0 %v2013
    %2280 = vmatpush1.bf16.msra.mxu0 %v2012
    %2281 = vmatprep.subr.bf16.mxu0 %v2015
    %2282 = vmatpush1.bf16.msra.mxu0 %v2014
    %2283 = vmatprep.subr.bf16.mxu0 %v2017
    %2284 = vmatpush1.bf16.msra.mxu0 %v2016
    %2285 = vmatprep.subr.bf16.mxu0 %v2019
    %2286 = vmatpush1.bf16.msra.mxu0 %v2018
    %2287 = vmatprep.subr.bf16.mxu0 %v2021
    %2288 = vmatpush1.bf16.msra.mxu0 %v2020
    %2289 = vmatprep.subr.bf16.mxu0 %v2023
    %2290 = vmatpush1.bf16.msra.mxu0 %v2022
    %2291 = vmatprep.subr.bf16.mxu0 %v2025
    %2292 = vmatpush1.bf16.msra.mxu0 %v2024
    %2293 = vmatprep.subr.bf16.mxu0 %v2027
    %2294 = vmatpush1.bf16.msra.mxu0 %v2026
    %2295 = vmatprep.subr.bf16.mxu0 %v2029
    %2296 = vmatpush1.bf16.msra.mxu0 %v2028
    %2297 = vmatprep.subr.bf16.mxu0 %v2031
    %2298 = vmatpush1.bf16.msra.mxu0 %v2030
    %2299 = vmatprep.subr.bf16.mxu0 %v2033
    %2300 = vmatpush1.bf16.msra.mxu0 %v2032
    %2301 = vmatprep.mubr.bf16.mxu0 %v1441
    %2302 = vmatmul.mubr.bf16.gmra.mrb[0].mxu0 %v1440
    %v2303 = vpop.f32.mrb[0].mxu0
    %v2304 = vadd.f32 %v2261, %v2303
    %v2305 = vpop.f32.mrb[0].mxu0
    %v2306 = vadd.f32 %v2263, %v2305
    %v2307 = vpop.f32.mrb[0].mxu0
    %v2308 = vadd.f32 %v2265, %v2307
    %v2309 = vpop.f32.mrb[0].mxu0
    %v2310 = vadd.f32 %v2267, %v2309
    %2311 = vdwg.mxu0
    %2312 = vmatprep.subr.bf16.mxu0 %v2035
    %2313 = vmatpush1.bf16.msra.mxu0 %v2034
    %2314 = vmatprep.subr.bf16.mxu0 %v2037
    %2315 = vmatpush1.bf16.msra.mxu0 %v2036
    %2316 = vmatprep.subr.bf16.mxu0 %v2039
    %2317 = vmatpush1.bf16.msra.mxu0 %v2038
    %2318 = vmatprep.subr.bf16.mxu0 %v2041
    %2319 = vmatpush1.bf16.msra.mxu0 %v2040
    %2320 = vmatprep.subr.bf16.mxu0 %v2043
    %2321 = vmatpush1.bf16.msra.mxu0 %v2042
    %2322 = vmatprep.subr.bf16.mxu0 %v2045
    %2323 = vmatpush1.bf16.msra.mxu0 %v2044
    %2324 = vmatprep.subr.bf16.mxu0 %v2047
    %2325 = vmatpush1.bf16.msra.mxu0 %v2046
    %2326 = vmatprep.subr.bf16.mxu0 %v2049
    %2327 = vmatpush1.bf16.msra.mxu0 %v2048
    %2328 = vmatprep.subr.bf16.mxu0 %v2051
    %2329 = vmatpush1.bf16.msra.mxu0 %v2050
    %2330 = vmatprep.subr.bf16.mxu0 %v2053
    %2331 = vmatpush1.bf16.msra.mxu0 %v2052
    %2332 = vmatprep.subr.bf16.mxu0 %v2055
    %2333 = vmatpush1.bf16.msra.mxu0 %v2054
    %2334 = vmatprep.subr.bf16.mxu0 %v2057
    %2335 = vmatpush1.bf16.msra.mxu0 %v2056
    %2336 = vmatprep.subr.bf16.mxu0 %v2059
    %2337 = vmatpush1.bf16.msra.mxu0 %v2058
    %2338 = vmatprep.subr.bf16.mxu0 %v2061
    %2339 = vmatpush1.bf16.msra.mxu0 %v2060
    %2340 = vmatprep.subr.bf16.mxu0 %v2063
    %2341 = vmatpush1.bf16.msra.mxu0 %v2062
    %2342 = vmatprep.subr.bf16.mxu0 %v2065
    %2343 = vmatpush1.bf16.msra.mxu0 %v2064
    %2344 = vmatprep.mubr.bf16.mxu0 %v1443
    %2345 = vmatmul.mubr.bf16.gmra.mrb[0].mxu0 %v1442
    %v2346 = vpop.f32.mrb[0].mxu0
    %v2347 = vadd.f32 %v2304, %v2346
    %v2348 = vpop.f32.mrb[0].mxu0
    %v2349 = vadd.f32 %v2306, %v2348
    %v2350 = vpop.f32.mrb[0].mxu0
    %v2351 = vadd.f32 %v2308, %v2350
    %v2352 = vpop.f32.mrb[0].mxu0
    %v2353 = vadd.f32 %v2310, %v2352
    %2354 = vdwg.mxu0
    %2355 = vmatprep.subr.bf16.mxu0 %v2067
    %2356 = vmatpush1.bf16.msra.mxu0 %v2066
    %2357 = vmatprep.subr.bf16.mxu0 %v2069
    %2358 = vmatpush1.bf16.msra.mxu0 %v2068
    %2359 = vmatprep.subr.bf16.mxu0 %v2071
    %2360 = vmatpush1.bf16.msra.mxu0 %v2070
    %2361 = vmatprep.subr.bf16.mxu0 %v2073
    %2362 = vmatpush1.bf16.msra.mxu0 %v2072
    %2363 = vmatprep.subr.bf16.mxu0 %v2075
    %2364 = vmatpush1.bf16.msra.mxu0 %v2074
    %2365 = vmatprep.subr.bf16.mxu0 %v2077
    %2366 = vmatpush1.bf16.msra.mxu0 %v2076
    %2367 = vmatprep.subr.bf16.mxu0 %v2079
    %2368 = vmatpush1.bf16.msra.mxu0 %v2078
    %2369 = vmatprep.subr.bf16.mxu0 %v2081
    %2370 = vmatpush1.bf16.msra.mxu0 %v2080
    %2371 = vmatprep.subr.bf16.mxu0 %v2083
    %2372 = vmatpush1.bf16.msra.mxu0 %v2082
    %2373 = vmatprep.subr.bf16.mxu0 %v2085
    %2374 = vmatpush1.bf16.msra.mxu0 %v2084
    %2375 = vmatprep.subr.bf16.mxu0 %v2087
    %2376 = vmatpush1.bf16.msra.mxu0 %v2086
    %2377 = vmatprep.subr.bf16.mxu0 %v2089
    %2378 = vmatpush1.bf16.msra.mxu0 %v2088
    %2379 = vmatprep.subr.bf16.mxu0 %v2091
    %2380 = vmatpush1.bf16.msra.mxu0 %v2090
    %2381 = vmatprep.subr.bf16.mxu0 %v2093
    %2382 = vmatpush1.bf16.msra.mxu0 %v2092
    %2383 = vmatprep.subr.bf16.mxu0 %v2095
    %2384 = vmatpush1.bf16.msra.mxu0 %v2094
    %2385 = vmatprep.subr.bf16.mxu0 %v2097
    %2386 = vmatpush1.bf16.msra.mxu0 %v2096
    %2387 = vmatprep.mubr.bf16.mxu0 %v1445
    %2388 = vmatmul.mubr.bf16.gmra.mrb[0].mxu0 %v1444
    %v2389 = vpop.f32.mrb[0].mxu0
    %v2390 = vadd.f32 %v2347, %v2389
    %v2391 = vpop.f32.mrb[0].mxu0
    %v2392 = vadd.f32 %v2349, %v2391
    %v2393 = vpop.f32.mrb[0].mxu0
    %v2394 = vadd.f32 %v2351, %v2393
    %v2395 = vpop.f32.mrb[0].mxu0
    %v2396 = vadd.f32 %v2353, %v2395
    %2397 = vdwg.mxu0
    %v2398 = vtanh.pop %v2390
    %v2399 = vtanh.pop %v2392
    %v2400 = vtanh.pop %v2394
    %v2401 = vtanh.pop %v2396
    %v2402 = vpack.c.bf16 %v2400, %v2398
    %v2403 = vpack.c.bf16 %v2401, %v2399
    %v2404 = vld [vmem:[#allocation10] sm:$0xf]
    %v2405 = vld [vmem:[#allocation10 + $0x4] sm:$0xf]
    %v2406 = vld [vmem:[#allocation10 + $0x8] sm:$0xf]
    %v2407 = vld [vmem:[#allocation10 + $0xc] sm:$0xf]
    %v2408 = vld [vmem:[#allocation10 + $0x10] sm:$0xf]
    %v2409 = vld [vmem:[#allocation10 + $0x14] sm:$0xf]
    %v2410 = vld [vmem:[#allocation10 + $0x18] sm:$0xf]
    %v2411 = vld [vmem:[#allocation10 + $0x1c] sm:$0xf]
    %v2412 = vld [vmem:[#allocation10 + $0x20] sm:$0xf]
    %v2413 = vld [vmem:[#allocation10 + $0x24] sm:$0xf]
    %v2414 = vld [vmem:[#allocation10 + $0x28] sm:$0xf]
    %v2415 = vld [vmem:[#allocation10 + $0x2c] sm:$0xf]
    %v2416 = vld [vmem:[#allocation10 + $0x30] sm:$0xf]
    %v2417 = vld [vmem:[#allocation10 + $0x34] sm:$0xf]
    %v2418 = vld [vmem:[#allocation10 + $0x38] sm:$0xf]
    %v2419 = vld [vmem:[#allocation10 + $0x3c] sm:$0xf]
    %v2420 = vld [vmem:[#allocation10 + $0x40] sm:$0xf]
    %v2421 = vld [vmem:[#allocation10 + $0x44] sm:$0xf]
    %v2422 = vld [vmem:[#allocation10 + $0x48] sm:$0xf]
    %v2423 = vld [vmem:[#allocation10 + $0x4c] sm:$0xf]
    %v2424 = vld [vmem:[#allocation10 + $0x50] sm:$0xf]
    %v2425 = vld [vmem:[#allocation10 + $0x54] sm:$0xf]
    %v2426 = vld [vmem:[#allocation10 + $0x58] sm:$0xf]
    %v2427 = vld [vmem:[#allocation10 + $0x5c] sm:$0xf]
    %v2428 = vld [vmem:[#allocation10 + $0x60] sm:$0xf]
    %v2429 = vld [vmem:[#allocation10 + $0x64] sm:$0xf]
    %v2430 = vld [vmem:[#allocation10 + $0x68] sm:$0xf]
    %v2431 = vld [vmem:[#allocation10 + $0x6c] sm:$0xf]
    %v2432 = vld [vmem:[#allocation10 + $0x70] sm:$0xf]
    %v2433 = vld [vmem:[#allocation10 + $0x74] sm:$0xf]
    %v2434 = vld [vmem:[#allocation10 + $0x78] sm:$0xf]
    %v2435 = vld [vmem:[#allocation10 + $0x7c] sm:$0xf]
    %v2436 = vld [vmem:[%s6] sm:$0x1]
    %v2438 = vlaneseq
    %v2439 = vshrl.u32 %v2438, 7
    %v2440 = vsub.s32 0, %v2439
    %v2441 = vrot.slane %v2436, %v2440
    %v2475 = vunpack.c.l.b16 %v2404
    %v2476 = vunpack.c.l.b16 %v2405
    %v2477 = vunpack.c.l.b16 %v2406
    %v2478 = vunpack.c.l.b16 %v2407
    %v2479 = vunpack.c.l.b16 %v2408
    %v2480 = vunpack.c.l.b16 %v2409
    %v2481 = vunpack.c.l.b16 %v2410
    %v2482 = vunpack.c.l.b16 %v2411
    %v2483 = vunpack.c.l.b16 %v2412
    %v2484 = vunpack.c.l.b16 %v2413
    %v2485 = vunpack.c.l.b16 %v2414
    %v2486 = vunpack.c.l.b16 %v2415
    %v2487 = vunpack.c.l.b16 %v2416
    %v2488 = vunpack.c.l.b16 %v2417
    %v2489 = vunpack.c.l.b16 %v2418
    %v2490 = vunpack.c.l.b16 %v2419
    %v2491 = vunpack.c.l.b16 %v2420
    %v2492 = vunpack.c.l.b16 %v2421
    %v2493 = vunpack.c.l.b16 %v2422
    %v2494 = vunpack.c.l.b16 %v2423
    %v2495 = vunpack.c.l.b16 %v2424
    %v2496 = vunpack.c.l.b16 %v2425
    %v2497 = vunpack.c.l.b16 %v2426
    %v2498 = vunpack.c.l.b16 %v2427
    %v2499 = vunpack.c.l.b16 %v2428
    %v2500 = vunpack.c.l.b16 %v2429
    %v2501 = vunpack.c.l.b16 %v2430
    %v2502 = vunpack.c.l.b16 %v2431
    %v2503 = vunpack.c.l.b16 %v2432
    %v2504 = vunpack.c.l.b16 %v2433
    %v2505 = vunpack.c.l.b16 %v2434
    %v2506 = vunpack.c.l.b16 %v2435
    %v2507 = vpack.c.b16 %v2476, %v2475
    %v2508 = vpack.c.b16 %v2478, %v2477
    %v2509 = vpack.c.b16 %v2480, %v2479
    %v2510 = vpack.c.b16 %v2482, %v2481
    %v2511 = vpack.c.b16 %v2484, %v2483
    %v2512 = vpack.c.b16 %v2486, %v2485
    %v2513 = vpack.c.b16 %v2488, %v2487
    %v2514 = vpack.c.b16 %v2490, %v2489
    %v2515 = vpack.c.b16 %v2492, %v2491
    %v2516 = vpack.c.b16 %v2494, %v2493
    %v2517 = vpack.c.b16 %v2496, %v2495
    %v2518 = vpack.c.b16 %v2498, %v2497
    %v2519 = vpack.c.b16 %v2500, %v2499
    %v2520 = vpack.c.b16 %v2502, %v2501
    %v2521 = vpack.c.b16 %v2504, %v2503
    %v2522 = vpack.c.b16 %v2506, %v2505
    %2539 = vmatprep.subr.bf16.mxu0 0
    %2540 = vmatpush1.bf16.msra.mxu0 %v2507
    %2541 = vmatprep.subr.bf16.mxu0 0
    %2542 = vmatpush1.bf16.msra.mxu0 %v2508
    %2543 = vmatprep.subr.bf16.mxu0 0
    %2544 = vmatpush1.bf16.msra.mxu0 %v2509
    %2545 = vmatprep.subr.bf16.mxu0 0
    %2546 = vmatpush1.bf16.msra.mxu0 %v2510
    %2547 = vmatprep.subr.bf16.mxu0 0
    %2548 = vmatpush1.bf16.msra.mxu0 %v2511
    %2549 = vmatprep.subr.bf16.mxu0 0
    %2550 = vmatpush1.bf16.msra.mxu0 %v2512
    %2551 = vmatprep.subr.bf16.mxu0 0
    %2552 = vmatpush1.bf16.msra.mxu0 %v2513
    %2553 = vmatprep.subr.bf16.mxu0 0
    %2554 = vmatpush1.bf16.msra.mxu0 %v2514
    %2555 = vmatprep.subr.bf16.mxu0 0
    %2556 = vmatpush1.bf16.msra.mxu0 %v2515
    %2557 = vmatprep.subr.bf16.mxu0 0
    %2558 = vmatpush1.bf16.msra.mxu0 %v2516
    %2559 = vmatprep.subr.bf16.mxu0 0
    %2560 = vmatpush1.bf16.msra.mxu0 %v2517
    %2561 = vmatprep.subr.bf16.mxu0 0
    %2562 = vmatpush1.bf16.msra.mxu0 %v2518
    %2563 = vmatprep.subr.bf16.mxu0 0
    %2564 = vmatpush1.bf16.msra.mxu0 %v2519
    %2565 = vmatprep.subr.bf16.mxu0 0
    %2566 = vmatpush1.bf16.msra.mxu0 %v2520
    %2567 = vmatprep.subr.bf16.mxu0 0
    %2568 = vmatpush1.bf16.msra.mxu0 %v2521
    %2569 = vmatprep.subr.bf16.mxu0 0
    %2570 = vmatpush1.bf16.msra.mxu0 %v2522
    %2571 = vmatprep.mubr.bf16.mxu0 %v2403
    %2572 = vmatmul.mubr.bf16.gmra.mrb[0].mxu0 %v2402
    %v2573 = vpop.f32.mrb[0].mxu0
    %v2574 = vadd.f32 %v2441, %v2573
    %v2575 = vpop.f32.mrb[0].mxu0
    %v2576 = vpop.f32.mrb[0].mxu0
    %v2577 = vadd.f32 %v2441, %v2576
    %v2578 = vpop.f32.mrb[0].mxu0
    %2579 = vdwg.mxu0
    %v2580 = vmax.f32 %v2574, 0.0
    %v2581 = vmax.f32 %v2577, 0.0
    %v2582 = vlaneseq
    %v2583 = vand.u32 %v2582, 127
    %vm2584 = vcmp.lt.s32.totalorder %v2583, 5
    %v2585 = vsel %vm2584, %v2580, -inf
    %v2586 = vsel %vm2584, %v2581, -inf
    %2587 = vmax.xlane.f32.xlu0 %v2585
    %v2588 = vpop.xlane.xlu0 %2587
    %2589 = vmax.xlane.f32.xlu0 %v2586
    %v2590 = vpop.xlane.xlu0 %2589
    %v2591 = vsub.f32 %v2585, %v2588
    %v2592 = vsub.f32 %v2586, %v2590
    %v2593 = vmul.f32 %v2591, 1.442695
    %v2594 = vpow.pop %v2593
    %v2595 = vmul.f32 %v2592, 1.442695
    %v2596 = vpow.pop %v2595
    %2597 = vadd.xlane.f32.xlu0 %v2594
    %v2598 = vpop.xlane.xlu0 %2597
    %2599 = vadd.xlane.f32.xlu0 %v2596
    %v2600 = vpop.xlane.xlu0 %2599
    %v2601 = vrcp.pop %v2598
    %v2602 = vmul.f32 %v2594, %v2601
    %v2603 = vrcp.pop %v2600
    %v2604 = vmul.f32 %v2596, %v2603
    %2605 = vst [vmem:[#allocation11] sm:$0xff] %v2602
    %2606 = vst [vmem:[#allocation11 + $0x8] sm:$0xff] %v2604
    // Predicated region
    $region50: #{tpu_custom_call.1} parent=1 // pred_check
      _
    $region51: #{tpu_custom_call.1} parent=1 // pred_check_branch
      %2608 = sbr.rel (0) target = $region53
    $region52: #{tpu_custom_call.1} parent=1 // pred_region
      %s2610 = ssub.s32 256, 256
      %2611 = vsyncadd [#allocation4], %s2610
      %s2612 = sshll.u32 [#allocation11], 4
      %s2613 = int_to_ptr.vmem [resolvable:$true] %s2612
      %2618 = dma.vmem_to_hbm [thread:$0]  %s2613, 256, %s7, [#allocation4], 128, 128, 8
    $region53: #{tpu_custom_call.1} parent=1 // pred_fallthru
      _
    // Predicated region
    $region54: #{tpu_custom_call.1} parent=1 // pred_check
      _
    $region55: #{tpu_custom_call.1} parent=1 // pred_check_branch
      %2620 = sbr.rel (0) target = $region57
    $region56: #{tpu_custom_call.1} parent=1 // pred_region
      %2621 = dma.done [#allocation4], 256
    $region57: #{tpu_custom_call.1} parent=1 // pred_fallthru
      _
    %2622 = vsyncpa [#allocation3], 1
    %2623 = vsyncpa [#allocation6], 1
    %2624 = vsyncpa [#allocation9], 1
    %2625 = vsyncpa [#allocation4], 1

</llo_original>
